<compile_context>
chip_gen: v5e
topology: v5e:2x2
jax: 0.10.0
libtpu: 0.0.40
codegen_flags: <defaults>
</compile_context>

<pallas_src>
import functools

import jax
import jax.numpy as jnp
from jax.experimental import pallas as pl
from jax.experimental.pallas import tpu as pltpu


# ----------------------------------------------------------------------------
# Fused kernel: per-view  [ conv stack over (T, L)  ->  GRU over T ]
# ----------------------------------------------------------------------------
def _cross_view_kernel(x_ref, p_ref, wc_ref, bc_ref,
                       wih_ref, whh_ref, bih_ref, bhh_ref,
                       o_ref, *, T, L, E):
    N = x_ref.shape[0]

    x = x_ref[...]                    # (N, E)        shared embedding
    p_all = p_ref[0]                  # (T, N, N)     this view's propagation
    wc = wc_ref[0]                    # (E, T*L*E)    all conv weights, concat
    bc = bc_ref[0]                    # (T*L, E)      all conv biases

    # ---- graph-conv stack: one wide MXU contraction for all (t, l) ----------
    xw = jnp.dot(x, wc, preferred_element_type=jnp.float32)      # (N, T*L*E)

    g_list = []
    for t in range(T):
        xw_t = xw[:, t * L * E:(t + 1) * L * E]                   # (N, L*E)
        ht = jnp.dot(p_all[t], xw_t,
                     preferred_element_type=jnp.float32)          # (N, L*E)
        acc = jnp.zeros((N, E), dtype=jnp.float32)
        for l in range(L):
            h = ht[:, l * E:(l + 1) * E] + bc[t * L + l:t * L + l + 1, :]
            # F.normalize(h, dim=-1, p=2): rsqrt(max(ss, eps^2)) == /max(||h||, eps)
            ss = jnp.sum(h * h, axis=-1, keepdims=True)
            acc = acc + h * jax.lax.rsqrt(jnp.maximum(ss, 1e-24))
        g_list.append(acc)                                        # (N, E)

    # ---- GRU (PyTorch gate order r, z, n; h0 = 0) ---------------------------
    wih = wih_ref[0]                  # (3, E, E)   lane-aligned per-gate blocks
    whh = whh_ref[0]                  # (3, E, E)
    bih = bih_ref[0]                  # (3, E)
    bhh = bhh_ref[0]                  # (3, E)

    # Input projections for ALL time steps, hoisted off the recurrent path.
    g_stack = jnp.concatenate(g_list, axis=0)                     # (T*N, E)
    gi = [jnp.dot(g_stack, wih[g], preferred_element_type=jnp.float32)
          + bih[g:g + 1, :] for g in range(3)]                    # 3 x (T*N, E)

    h = jnp.zeros((N, E), dtype=jnp.float32)
    for t in range(T):
        i_r = gi[0][t * N:(t + 1) * N]
        i_z = gi[1][t * N:(t + 1) * N]
        i_n = gi[2][t * N:(t + 1) * N]
        h_r = jnp.dot(h, whh[0], preferred_element_type=jnp.float32) + bhh[0:1, :]
        h_z = jnp.dot(h, whh[1], preferred_element_type=jnp.float32) + bhh[1:2, :]
        h_n = jnp.dot(h, whh[2], preferred_element_type=jnp.float32) + bhh[2:3, :]
        r = jax.nn.sigmoid(i_r + h_r)
        z = jax.nn.sigmoid(i_z + h_z)
        n = jnp.tanh(i_n + r * h_n)
        h = (1.0 - z) * n + z * h
        o_ref[0, t] = h.astype(o_ref.dtype)


def cross_view_stg_forward(X, P, Wc, Bc, Wih, Whh, Bih, Bhh):
    """X:(N,E)  P:(2,T,N,N)  Wc:(2,E,T*L*E)  Bc:(2,T*L,E)
       Wih/Whh:(2,3,E,E)  Bih/Bhh:(2,3,E)  ->  (x1, x2, h1, h2)."""
    V, T, N, _ = P.shape
    E = X.shape[1]
    L = Wc.shape[2] // (T * E)
    kernel = functools.partial(_cross_view_kernel, T=T, L=L, E=E)

    h_all = pl.pallas_call(
        kernel,
        out_shape=jax.ShapeDtypeStruct((V, T, N, E), jnp.float32),
        grid=(V,),
        in_specs=[
            pl.BlockSpec((N, E), lambda v: (0, 0)),                 # X (shared)
            pl.BlockSpec((1, T, N, N), lambda v: (v, 0, 0, 0)),     # P
            pl.BlockSpec((1, E, T * L * E), lambda v: (v, 0, 0)),   # conv W cat
            pl.BlockSpec((1, T * L, E), lambda v: (v, 0, 0)),       # conv b
            pl.BlockSpec((1, 3, E, E), lambda v: (v, 0, 0, 0)),     # W_ih
            pl.BlockSpec((1, 3, E, E), lambda v: (v, 0, 0, 0)),     # W_hh
            pl.BlockSpec((1, 3, E), lambda v: (v, 0, 0)),           # b_ih
            pl.BlockSpec((1, 3, E), lambda v: (v, 0, 0)),           # b_hh
        ],
        out_specs=pl.BlockSpec((1, T, N, E), lambda v: (v, 0, 0, 0)),
        compiler_params=pltpu.CompilerParams(
            dimension_semantics=("parallel",)),                     # 2 TCs on v7x
    )(X, P, Wc, Bc, Wih, Whh, Bih, Bhh)

    # PyTorch convention: h* batch_first (N, T, E); x* = final hidden state.
    x1 = h_all[0, T - 1]
    x2 = h_all[1, T - 1]
    h1 = jnp.transpose(h_all[0], (1, 0, 2))
    h2 = jnp.transpose(h_all[1], (1, 0, 2))
    return x1, x2, h1, h2


# ----------------------------------------------------------------------------
# Glue: deterministic dense graphs + parameter init
# ----------------------------------------------------------------------------
def build_gcn_propagation(key, T, N):
    """Dense symmetric-normalized adjacency with self-loops (gcn_norm-style)."""
    ks = jax.random.split(key, T)
    mats = []
    for t in range(T):
        w = jax.random.uniform(ks[t], (N, N), dtype=jnp.float32)
        a = jnp.where(w > 0.6, w, 0.0)
        a = 0.5 * (a + a.T)
        a_hat = a + jnp.eye(N, dtype=jnp.float32)
        deg = jnp.sum(a_hat, axis=1)
        dinv = 1.0 / jnp.sqrt(jnp.maximum(deg, 1e-12))
        mats.append(dinv[:, None] * a_hat * dinv[None, :])
    return jnp.stack(mats, axis=0)


def build_hyper_propagation(key, T, N, M):
    """Dense hypergraph propagation D^-1 H B^-1 H^T (HypergraphConv, no attn)."""
    ks = jax.random.split(key, T)
    mats = []
    for t in range(T):
        h = (jax.random.uniform(ks[t], (N, M)) < 0.4).astype(jnp.float32)
        d = jnp.sum(h, axis=1)
        b = jnp.sum(h, axis=0)
        dinv = 1.0 / jnp.maximum(d, 1e-12)
        binv = 1.0 / jnp.maximum(b, 1e-12)
        mats.append(dinv[:, None] * (h * binv[None, :]) @ h.T)
    return jnp.stack(mats, axis=0)


def init_conv_params(key, T, L, E):
    """Per-(t,l) conv weights packed as (E, T*L*E) / biases as (T*L, E)."""
    kw, _ = jax.random.split(key)
    s = jnp.sqrt(6.0 / (E + E))                      # glorot-uniform-ish
    W = jax.random.uniform(kw, (T, L, E, E), minval=-s, maxval=s,
                           dtype=jnp.float32)
    B = jnp.zeros((T, L, E), dtype=jnp.float32)
    Wc = jnp.transpose(W.reshape(T * L, E, E), (1, 0, 2)).reshape(E, T * L * E)
    Bc = B.reshape(T * L, E)
    return Wc, Bc


def init_gru_params(key, E):
    """Single-layer GRU params; gates stored as aligned (3, E, E) blocks."""
    k1, k2, k3, k4 = jax.random.split(key, 4)
    s = 1.0 / jnp.sqrt(E)                            # PyTorch GRU default scale
    Wih = jax.random.uniform(k1, (3, E, E), minval=-s, maxval=s, dtype=jnp.float32)
    Whh = jax.random.uniform(k2, (3, E, E), minval=-s, maxval=s, dtype=jnp.float32)
    bih = jax.random.uniform(k3, (3, E), minval=-s, maxval=s, dtype=jnp.float32)
    bhh = jax.random.uniform(k4, (3, E), minval=-s, maxval=s, dtype=jnp.float32)
    return Wih, Whh, bih, bhh


if __name__ == "__main__":
    # N = items (nodes), E = emb_size, T = opt.n_time, L = opt.layer,
    # M = hyperedges per slice.
    N, E, T, L, M = 16, 32, 3, 2, 8

    root = jax.random.PRNGKey(0)
    k_emb, k_ga, k_hy, k_gw, k_hw, k_g1, k_g2 = jax.random.split(root, 7)

    embedding = jax.random.normal(k_emb, (N, E), dtype=jnp.float32)

    # TODO(synk): real model loads sparse graphs from disk; represented here by
    # deterministic dense pre-normalized propagation matrices.
    P_gcn = build_gcn_propagation(k_ga, T, N)        # (T, N, N)
    P_hyp = build_hyper_propagation(k_hy, T, N, M)   # (T, N, N)
    P = jnp.stack([P_gcn, P_hyp], axis=0)            # (2, T, N, N)

    Wc_g, Bc_g = init_conv_params(k_gw, T, L, E)
    Wc_h, Bc_h = init_conv_params(k_hw, T, L, E)
    Wc = jnp.stack([Wc_g, Wc_h], axis=0)             # (2, E, T*L*E)
    Bc = jnp.stack([Bc_g, Bc_h], axis=0)             # (2, T*L, E)

    g1 = init_gru_params(k_g1, E)
    g2 = init_gru_params(k_g2, E)
    Wih = jnp.stack([g1[0], g2[0]], axis=0)          # (2, 3, E, E)
    Whh = jnp.stack([g1[1], g2[1]], axis=0)
    Bih = jnp.stack([g1[2], g2[2]], axis=0)          # (2, 3, E)
    Bhh = jnp.stack([g1[3], g2[3]], axis=0)

    x1, x2, h1, h2 = cross_view_stg_forward(embedding, P, Wc, Bc,
                                            Wih, Whh, Bih, Bhh)
    jax.block_until_ready((x1, x2, h1, h2))

    assert x1.shape == (N, E) and x2.shape == (N, E)
    assert h1.shape == (N, T, E) and h2.shape == (N, T, E)
    assert bool(jnp.all(jnp.isfinite(x1))) and bool(jnp.all(jnp.isfinite(h2)))
    print("KERNEL_OK")
</pallas_src>

<mosaic_0001>
module attributes {stable_mosaic.version = 11 : i64} {
  func.func @_cross_view_kernel(%arg0: i32, %arg1: memref<16x32xf32, #tpu.memory_space<vmem>>, %arg2: memref<1x3x16x16xf32, #tpu.memory_space<vmem>>, %arg3: memref<1x32x192xf32, #tpu.memory_space<vmem>>, %arg4: memref<1x6x32xf32, #tpu.memory_space<vmem>>, %arg5: memref<1x3x32x32xf32, #tpu.memory_space<vmem>>, %arg6: memref<1x3x32x32xf32, #tpu.memory_space<vmem>>, %arg7: memref<1x3x32xf32, #tpu.memory_space<vmem>>, %arg8: memref<1x3x32xf32, #tpu.memory_space<vmem>>, %arg9: memref<1x3x16x32xf32, #tpu.memory_space<vmem>>) attributes {dimension_semantics = [#tpu.dimension_semantics<parallel>], iteration_bounds = array<i64: 2>, scalar_prefetch = 0 : i64, scratch_operands = 0 : i64, tpu.core_type = #tpu.core_type<tc>, window_params = [{pipeline_mode = #tpu.pipeline_mode<synchronous>, transform_indices = @transform_0, window_bounds = array<i64: 16, 32>}, {transform_indices = @transform_1, window_bounds = array<i64: 1, 3, 16, 16>}, {transform_indices = @transform_2, window_bounds = array<i64: 1, 32, 192>}, {transform_indices = @transform_3, window_bounds = array<i64: 1, 6, 32>}, {transform_indices = @transform_4, window_bounds = array<i64: 1, 3, 32, 32>}, {transform_indices = @transform_5, window_bounds = array<i64: 1, 3, 32, 32>}, {transform_indices = @transform_6, window_bounds = array<i64: 1, 3, 32>}, {transform_indices = @transform_7, window_bounds = array<i64: 1, 3, 32>}, {transform_indices = @transform_8, window_bounds = array<i64: 1, 3, 16, 32>}]} {
    %c0 = arith.constant 0 : index
    %c0_0 = arith.constant 0 : index
    %0 = vector.load %arg1[%c0, %c0_0] : memref<16x32xf32, #tpu.memory_space<vmem>>, vector<16x32xf32>
    %c0_1 = arith.constant 0 : index
    %c0_2 = arith.constant 0 : index
    %c0_3 = arith.constant 0 : index
    %c0_4 = arith.constant 0 : index
    %1 = vector.load %arg2[%c0_1, %c0_2, %c0_3, %c0_4] : memref<1x3x16x16xf32, #tpu.memory_space<vmem>>, vector<1x3x16x16xf32>
    %2 = vector.shape_cast %1 : vector<1x3x16x16xf32> to vector<3x16x16xf32>
    %c0_5 = arith.constant 0 : index
    %c0_6 = arith.constant 0 : index
    %c0_7 = arith.constant 0 : index
    %3 = vector.load %arg3[%c0_5, %c0_6, %c0_7] : memref<1x32x192xf32, #tpu.memory_space<vmem>>, vector<1x32x192xf32>
    %4 = vector.shape_cast %3 : vector<1x32x192xf32> to vector<32x192xf32>
    %c0_8 = arith.constant 0 : index
    %c0_9 = arith.constant 0 : index
    %c0_10 = arith.constant 0 : index
    %5 = vector.load %arg4[%c0_8, %c0_9, %c0_10] : memref<1x6x32xf32, #tpu.memory_space<vmem>>, vector<1x6x32xf32>
    %6 = vector.shape_cast %5 : vector<1x6x32xf32> to vector<6x32xf32>
    %cst = arith.constant dense<0.000000e+00> : vector<16x192xf32>
    %7 = tpu.matmul %0, %4, %cst {dimension_numbers = #tpu.dot_dimension_numbers<[1], [0], [0], [1], [0, 0, 1, 1], [], []>} : vector<16x32xf32>, vector<32x192xf32>, vector<16x192xf32> -> vector<16x192xf32>
    %8 = vector.extract_strided_slice %7 {offsets = [0, 0], sizes = [16, 64], strides = [1, 1]} : vector<16x192xf32> to vector<16x64xf32>
    %9 = vector.extract_strided_slice %2 {offsets = [0, 0, 0], sizes = [1, 16, 16], strides = [1, 1, 1]} : vector<3x16x16xf32> to vector<1x16x16xf32>
    %10 = vector.shape_cast %9 : vector<1x16x16xf32> to vector<16x16xf32>
    %cst_11 = arith.constant dense<0.000000e+00> : vector<16x64xf32>
    %11 = tpu.matmul %10, %8, %cst_11 {dimension_numbers = #tpu.dot_dimension_numbers<[1], [0], [0], [1], [0, 0, 1, 1], [], []>} : vector<16x16xf32>, vector<16x64xf32>, vector<16x64xf32> -> vector<16x64xf32>
    %cst_12 = arith.constant 0.000000e+00 : f32
    %12 = vector.broadcast %cst_12 : f32 to vector<16x32xf32>
    %13 = vector.extract_strided_slice %11 {offsets = [0, 0], sizes = [16, 32], strides = [1, 1]} : vector<16x64xf32> to vector<16x32xf32>
    %14 = vector.extract_strided_slice %6 {offsets = [0, 0], sizes = [1, 32], strides = [1, 1]} : vector<6x32xf32> to vector<1x32xf32>
    %15 = vector.broadcast %14 : vector<1x32xf32> to vector<16x32xf32>
    %16 = arith.addf %13, %15 : vector<16x32xf32>
    %17 = arith.mulf %16, %16 : vector<16x32xf32>
    %cst_13 = arith.constant dense<0.000000e+00> : vector<16xf32>
    %18 = vector.multi_reduction <add>, %17, %cst_13 [1] : vector<16x32xf32> to vector<16xf32>
    %19 = vector.shape_cast %18 : vector<16xf32> to vector<16x1xf32>
    %cst_14 = arith.constant 1.000000e-24 : f32
    %20 = vector.broadcast %cst_14 : f32 to vector<16x1xf32>
    %21 = arith.maximumf %19, %20 : vector<16x1xf32>
    %22 = math.rsqrt %21 : vector<16x1xf32>
    %23 = vector.broadcast %22 : vector<16x1xf32> to vector<16x32xf32>
    %24 = arith.mulf %16, %23 : vector<16x32xf32>
    %25 = arith.addf %12, %24 : vector<16x32xf32>
    %26 = vector.extract_strided_slice %11 {offsets = [0, 32], sizes = [16, 32], strides = [1, 1]} : vector<16x64xf32> to vector<16x32xf32>
    %27 = vector.extract_strided_slice %6 {offsets = [1, 0], sizes = [1, 32], strides = [1, 1]} : vector<6x32xf32> to vector<1x32xf32>
    %28 = vector.broadcast %27 : vector<1x32xf32> to vector<16x32xf32>
    %29 = arith.addf %26, %28 : vector<16x32xf32>
    %30 = arith.mulf %29, %29 : vector<16x32xf32>
    %cst_15 = arith.constant dense<0.000000e+00> : vector<16xf32>
    %31 = vector.multi_reduction <add>, %30, %cst_15 [1] : vector<16x32xf32> to vector<16xf32>
    %32 = vector.shape_cast %31 : vector<16xf32> to vector<16x1xf32>
    %cst_16 = arith.constant 1.000000e-24 : f32
    %33 = vector.broadcast %cst_16 : f32 to vector<16x1xf32>
    %34 = arith.maximumf %32, %33 : vector<16x1xf32>
    %35 = math.rsqrt %34 : vector<16x1xf32>
    %36 = vector.broadcast %35 : vector<16x1xf32> to vector<16x32xf32>
    %37 = arith.mulf %29, %36 : vector<16x32xf32>
    %38 = arith.addf %25, %37 : vector<16x32xf32>
    %39 = vector.extract_strided_slice %7 {offsets = [0, 64], sizes = [16, 64], strides = [1, 1]} : vector<16x192xf32> to vector<16x64xf32>
    %40 = vector.extract_strided_slice %2 {offsets = [1, 0, 0], sizes = [1, 16, 16], strides = [1, 1, 1]} : vector<3x16x16xf32> to vector<1x16x16xf32>
    %41 = vector.shape_cast %40 : vector<1x16x16xf32> to vector<16x16xf32>
    %cst_17 = arith.constant dense<0.000000e+00> : vector<16x64xf32>
    %42 = tpu.matmul %41, %39, %cst_17 {dimension_numbers = #tpu.dot_dimension_numbers<[1], [0], [0], [1], [0, 0, 1, 1], [], []>} : vector<16x16xf32>, vector<16x64xf32>, vector<16x64xf32> -> vector<16x64xf32>
    %cst_18 = arith.constant 0.000000e+00 : f32
    %43 = vector.broadcast %cst_18 : f32 to vector<16x32xf32>
    %44 = vector.extract_strided_slice %42 {offsets = [0, 0], sizes = [16, 32], strides = [1, 1]} : vector<16x64xf32> to vector<16x32xf32>
    %45 = vector.extract_strided_slice %6 {offsets = [2, 0], sizes = [1, 32], strides = [1, 1]} : vector<6x32xf32> to vector<1x32xf32>
    %46 = vector.broadcast %45 : vector<1x32xf32> to vector<16x32xf32>
    %47 = arith.addf %44, %46 : vector<16x32xf32>
    %48 = arith.mulf %47, %47 : vector<16x32xf32>
    %cst_19 = arith.constant dense<0.000000e+00> : vector<16xf32>
    %49 = vector.multi_reduction <add>, %48, %cst_19 [1] : vector<16x32xf32> to vector<16xf32>
    %50 = vector.shape_cast %49 : vector<16xf32> to vector<16x1xf32>
    %cst_20 = arith.constant 1.000000e-24 : f32
    %51 = vector.broadcast %cst_20 : f32 to vector<16x1xf32>
    %52 = arith.maximumf %50, %51 : vector<16x1xf32>
    %53 = math.rsqrt %52 : vector<16x1xf32>
    %54 = vector.broadcast %53 : vector<16x1xf32> to vector<16x32xf32>
    %55 = arith.mulf %47, %54 : vector<16x32xf32>
    %56 = arith.addf %43, %55 : vector<16x32xf32>
    %57 = vector.extract_strided_slice %42 {offsets = [0, 32], sizes = [16, 32], strides = [1, 1]} : vector<16x64xf32> to vector<16x32xf32>
    %58 = vector.extract_strided_slice %6 {offsets = [3, 0], sizes = [1, 32], strides = [1, 1]} : vector<6x32xf32> to vector<1x32xf32>
    %59 = vector.broadcast %58 : vector<1x32xf32> to vector<16x32xf32>
    %60 = arith.addf %57, %59 : vector<16x32xf32>
    %61 = arith.mulf %60, %60 : vector<16x32xf32>
    %cst_21 = arith.constant dense<0.000000e+00> : vector<16xf32>
    %62 = vector.multi_reduction <add>, %61, %cst_21 [1] : vector<16x32xf32> to vector<16xf32>
    %63 = vector.shape_cast %62 : vector<16xf32> to vector<16x1xf32>
    %cst_22 = arith.constant 1.000000e-24 : f32
    %64 = vector.broadcast %cst_22 : f32 to vector<16x1xf32>
    %65 = arith.maximumf %63, %64 : vector<16x1xf32>
    %66 = math.rsqrt %65 : vector<16x1xf32>
    %67 = vector.broadcast %66 : vector<16x1xf32> to vector<16x32xf32>
    %68 = arith.mulf %60, %67 : vector<16x32xf32>
    %69 = arith.addf %56, %68 : vector<16x32xf32>
    %70 = vector.extract_strided_slice %7 {offsets = [0, 128], sizes = [16, 64], strides = [1, 1]} : vector<16x192xf32> to vector<16x64xf32>
    %71 = vector.extract_strided_slice %2 {offsets = [2, 0, 0], sizes = [1, 16, 16], strides = [1, 1, 1]} : vector<3x16x16xf32> to vector<1x16x16xf32>
    %72 = vector.shape_cast %71 : vector<1x16x16xf32> to vector<16x16xf32>
    %cst_23 = arith.constant dense<0.000000e+00> : vector<16x64xf32>
    %73 = tpu.matmul %72, %70, %cst_23 {dimension_numbers = #tpu.dot_dimension_numbers<[1], [0], [0], [1], [0, 0, 1, 1], [], []>} : vector<16x16xf32>, vector<16x64xf32>, vector<16x64xf32> -> vector<16x64xf32>
    %cst_24 = arith.constant 0.000000e+00 : f32
    %74 = vector.broadcast %cst_24 : f32 to vector<16x32xf32>
    %75 = vector.extract_strided_slice %73 {offsets = [0, 0], sizes = [16, 32], strides = [1, 1]} : vector<16x64xf32> to vector<16x32xf32>
    %76 = vector.extract_strided_slice %6 {offsets = [4, 0], sizes = [1, 32], strides = [1, 1]} : vector<6x32xf32> to vector<1x32xf32>
    %77 = vector.broadcast %76 : vector<1x32xf32> to vector<16x32xf32>
    %78 = arith.addf %75, %77 : vector<16x32xf32>
    %79 = arith.mulf %78, %78 : vector<16x32xf32>
    %cst_25 = arith.constant dense<0.000000e+00> : vector<16xf32>
    %80 = vector.multi_reduction <add>, %79, %cst_25 [1] : vector<16x32xf32> to vector<16xf32>
    %81 = vector.shape_cast %80 : vector<16xf32> to vector<16x1xf32>
    %cst_26 = arith.constant 1.000000e-24 : f32
    %82 = vector.broadcast %cst_26 : f32 to vector<16x1xf32>
    %83 = arith.maximumf %81, %82 : vector<16x1xf32>
    %84 = math.rsqrt %83 : vector<16x1xf32>
    %85 = vector.broadcast %84 : vector<16x1xf32> to vector<16x32xf32>
    %86 = arith.mulf %78, %85 : vector<16x32xf32>
    %87 = arith.addf %74, %86 : vector<16x32xf32>
    %88 = vector.extract_strided_slice %73 {offsets = [0, 32], sizes = [16, 32], strides = [1, 1]} : vector<16x64xf32> to vector<16x32xf32>
    %89 = vector.extract_strided_slice %6 {offsets = [5, 0], sizes = [1, 32], strides = [1, 1]} : vector<6x32xf32> to vector<1x32xf32>
    %90 = vector.broadcast %89 : vector<1x32xf32> to vector<16x32xf32>
    %91 = arith.addf %88, %90 : vector<16x32xf32>
    %92 = arith.mulf %91, %91 : vector<16x32xf32>
    %cst_27 = arith.constant dense<0.000000e+00> : vector<16xf32>
    %93 = vector.multi_reduction <add>, %92, %cst_27 [1] : vector<16x32xf32> to vector<16xf32>
    %94 = vector.shape_cast %93 : vector<16xf32> to vector<16x1xf32>
    %cst_28 = arith.constant 1.000000e-24 : f32
    %95 = vector.broadcast %cst_28 : f32 to vector<16x1xf32>
    %96 = arith.maximumf %94, %95 : vector<16x1xf32>
    %97 = math.rsqrt %96 : vector<16x1xf32>
    %98 = vector.broadcast %97 : vector<16x1xf32> to vector<16x32xf32>
    %99 = arith.mulf %91, %98 : vector<16x32xf32>
    %100 = arith.addf %87, %99 : vector<16x32xf32>
    %c0_29 = arith.constant 0 : index
    %c0_30 = arith.constant 0 : index
    %c0_31 = arith.constant 0 : index
    %c0_32 = arith.constant 0 : index
    %101 = vector.load %arg5[%c0_29, %c0_30, %c0_31, %c0_32] : memref<1x3x32x32xf32, #tpu.memory_space<vmem>>, vector<1x3x32x32xf32>
    %102 = vector.shape_cast %101 : vector<1x3x32x32xf32> to vector<3x32x32xf32>
    %c0_33 = arith.constant 0 : index
    %c0_34 = arith.constant 0 : index
    %c0_35 = arith.constant 0 : index
    %c0_36 = arith.constant 0 : index
    %103 = vector.load %arg6[%c0_33, %c0_34, %c0_35, %c0_36] : memref<1x3x32x32xf32, #tpu.memory_space<vmem>>, vector<1x3x32x32xf32>
    %104 = vector.shape_cast %103 : vector<1x3x32x32xf32> to vector<3x32x32xf32>
    %c0_37 = arith.constant 0 : index
    %c0_38 = arith.constant 0 : index
    %c0_39 = arith.constant 0 : index
    %105 = vector.load %arg7[%c0_37, %c0_38, %c0_39] : memref<1x3x32xf32, #tpu.memory_space<vmem>>, vector<1x3x32xf32>
    %106 = vector.shape_cast %105 : vector<1x3x32xf32> to vector<3x32xf32>
    %c0_40 = arith.constant 0 : index
    %c0_41 = arith.constant 0 : index
    %c0_42 = arith.constant 0 : index
    %107 = vector.load %arg8[%c0_40, %c0_41, %c0_42] : memref<1x3x32xf32, #tpu.memory_space<vmem>>, vector<1x3x32xf32>
    %108 = vector.shape_cast %107 : vector<1x3x32xf32> to vector<3x32xf32>
    %109 = tpu.concatenate %38, %69, %100 in 0 : vector<16x32xf32>, vector<16x32xf32>, vector<16x32xf32> -> vector<48x32xf32>
    %110 = vector.extract_strided_slice %102 {offsets = [0, 0, 0], sizes = [1, 32, 32], strides = [1, 1, 1]} : vector<3x32x32xf32> to vector<1x32x32xf32>
    %111 = vector.shape_cast %110 : vector<1x32x32xf32> to vector<32x32xf32>
    %cst_43 = arith.constant dense<0.000000e+00> : vector<48x32xf32>
    %112 = tpu.matmul %109, %111, %cst_43 {dimension_numbers = #tpu.dot_dimension_numbers<[1], [0], [0], [1], [0, 0, 1, 1], [], []>} : vector<48x32xf32>, vector<32x32xf32>, vector<48x32xf32> -> vector<48x32xf32>
    %113 = vector.extract_strided_slice %106 {offsets = [0, 0], sizes = [1, 32], strides = [1, 1]} : vector<3x32xf32> to vector<1x32xf32>
    %114 = vector.broadcast %113 : vector<1x32xf32> to vector<48x32xf32>
    %115 = arith.addf %112, %114 : vector<48x32xf32>
    %116 = vector.extract_strided_slice %102 {offsets = [1, 0, 0], sizes = [1, 32, 32], strides = [1, 1, 1]} : vector<3x32x32xf32> to vector<1x32x32xf32>
    %117 = vector.shape_cast %116 : vector<1x32x32xf32> to vector<32x32xf32>
    %cst_44 = arith.constant dense<0.000000e+00> : vector<48x32xf32>
    %118 = tpu.matmul %109, %117, %cst_44 {dimension_numbers = #tpu.dot_dimension_numbers<[1], [0], [0], [1], [0, 0, 1, 1], [], []>} : vector<48x32xf32>, vector<32x32xf32>, vector<48x32xf32> -> vector<48x32xf32>
    %119 = vector.extract_strided_slice %106 {offsets = [1, 0], sizes = [1, 32], strides = [1, 1]} : vector<3x32xf32> to vector<1x32xf32>
    %120 = vector.broadcast %119 : vector<1x32xf32> to vector<48x32xf32>
    %121 = arith.addf %118, %120 : vector<48x32xf32>
    %122 = vector.extract_strided_slice %102 {offsets = [2, 0, 0], sizes = [1, 32, 32], strides = [1, 1, 1]} : vector<3x32x32xf32> to vector<1x32x32xf32>
    %123 = vector.shape_cast %122 : vector<1x32x32xf32> to vector<32x32xf32>
    %cst_45 = arith.constant dense<0.000000e+00> : vector<48x32xf32>
    %124 = tpu.matmul %109, %123, %cst_45 {dimension_numbers = #tpu.dot_dimension_numbers<[1], [0], [0], [1], [0, 0, 1, 1], [], []>} : vector<48x32xf32>, vector<32x32xf32>, vector<48x32xf32> -> vector<48x32xf32>
    %125 = vector.extract_strided_slice %106 {offsets = [2, 0], sizes = [1, 32], strides = [1, 1]} : vector<3x32xf32> to vector<1x32xf32>
    %126 = vector.broadcast %125 : vector<1x32xf32> to vector<48x32xf32>
    %127 = arith.addf %124, %126 : vector<48x32xf32>
    %cst_46 = arith.constant 0.000000e+00 : f32
    %128 = vector.broadcast %cst_46 : f32 to vector<16x32xf32>
    %129 = vector.extract_strided_slice %115 {offsets = [0, 0], sizes = [16, 32], strides = [1, 1]} : vector<48x32xf32> to vector<16x32xf32>
    %130 = vector.extract_strided_slice %121 {offsets = [0, 0], sizes = [16, 32], strides = [1, 1]} : vector<48x32xf32> to vector<16x32xf32>
    %131 = vector.extract_strided_slice %127 {offsets = [0, 0], sizes = [16, 32], strides = [1, 1]} : vector<48x32xf32> to vector<16x32xf32>
    %132 = vector.extract_strided_slice %104 {offsets = [0, 0, 0], sizes = [1, 32, 32], strides = [1, 1, 1]} : vector<3x32x32xf32> to vector<1x32x32xf32>
    %133 = vector.shape_cast %132 : vector<1x32x32xf32> to vector<32x32xf32>
    %cst_47 = arith.constant dense<0.000000e+00> : vector<16x32xf32>
    %134 = tpu.matmul %128, %133, %cst_47 {dimension_numbers = #tpu.dot_dimension_numbers<[1], [0], [0], [1], [0, 0, 1, 1], [], []>} : vector<16x32xf32>, vector<32x32xf32>, vector<16x32xf32> -> vector<16x32xf32>
    %135 = vector.extract_strided_slice %108 {offsets = [0, 0], sizes = [1, 32], strides = [1, 1]} : vector<3x32xf32> to vector<1x32xf32>
    %136 = vector.broadcast %135 : vector<1x32xf32> to vector<16x32xf32>
    %137 = arith.addf %134, %136 : vector<16x32xf32>
    %138 = vector.extract_strided_slice %104 {offsets = [1, 0, 0], sizes = [1, 32, 32], strides = [1, 1, 1]} : vector<3x32x32xf32> to vector<1x32x32xf32>
    %139 = vector.shape_cast %138 : vector<1x32x32xf32> to vector<32x32xf32>
    %cst_48 = arith.constant dense<0.000000e+00> : vector<16x32xf32>
    %140 = tpu.matmul %128, %139, %cst_48 {dimension_numbers = #tpu.dot_dimension_numbers<[1], [0], [0], [1], [0, 0, 1, 1], [], []>} : vector<16x32xf32>, vector<32x32xf32>, vector<16x32xf32> -> vector<16x32xf32>
    %141 = vector.extract_strided_slice %108 {offsets = [1, 0], sizes = [1, 32], strides = [1, 1]} : vector<3x32xf32> to vector<1x32xf32>
    %142 = vector.broadcast %141 : vector<1x32xf32> to vector<16x32xf32>
    %143 = arith.addf %140, %142 : vector<16x32xf32>
    %144 = vector.extract_strided_slice %104 {offsets = [2, 0, 0], sizes = [1, 32, 32], strides = [1, 1, 1]} : vector<3x32x32xf32> to vector<1x32x32xf32>
    %145 = vector.shape_cast %144 : vector<1x32x32xf32> to vector<32x32xf32>
    %cst_49 = arith.constant dense<0.000000e+00> : vector<16x32xf32>
    %146 = tpu.matmul %128, %145, %cst_49 {dimension_numbers = #tpu.dot_dimension_numbers<[1], [0], [0], [1], [0, 0, 1, 1], [], []>} : vector<16x32xf32>, vector<32x32xf32>, vector<16x32xf32> -> vector<16x32xf32>
    %147 = vector.extract_strided_slice %108 {offsets = [2, 0], sizes = [1, 32], strides = [1, 1]} : vector<3x32xf32> to vector<1x32xf32>
    %148 = vector.broadcast %147 : vector<1x32xf32> to vector<16x32xf32>
    %149 = arith.addf %146, %148 : vector<16x32xf32>
    %150 = arith.addf %129, %137 : vector<16x32xf32>
    %151 = arith.negf %150 : vector<16x32xf32>
    %152 = math.exp %151 : vector<16x32xf32>
    %cst_50 = arith.constant 1.000000e+00 : f32
    %153 = vector.broadcast %cst_50 : f32 to vector<16x32xf32>
    %154 = arith.addf %153, %152 : vector<16x32xf32>
    %155 = arith.divf %153, %154 : vector<16x32xf32>
    %156 = arith.addf %130, %143 : vector<16x32xf32>
    %157 = arith.negf %156 : vector<16x32xf32>
    %158 = math.exp %157 : vector<16x32xf32>
    %cst_51 = arith.constant 1.000000e+00 : f32
    %159 = vector.broadcast %cst_51 : f32 to vector<16x32xf32>
    %160 = arith.addf %159, %158 : vector<16x32xf32>
    %161 = arith.divf %159, %160 : vector<16x32xf32>
    %162 = arith.mulf %155, %149 : vector<16x32xf32>
    %163 = arith.addf %131, %162 : vector<16x32xf32>
    %164 = math.tanh %163 : vector<16x32xf32>
    %cst_52 = arith.constant 1.000000e+00 : f32
    %165 = vector.broadcast %cst_52 : f32 to vector<16x32xf32>
    %166 = arith.subf %165, %161 : vector<16x32xf32>
    %167 = arith.mulf %166, %164 : vector<16x32xf32>
    %168 = arith.mulf %161, %128 : vector<16x32xf32>
    %169 = arith.addf %167, %168 : vector<16x32xf32>
    %c0_53 = arith.constant 0 : index
    %c0_54 = arith.constant 0 : index
    %c0_55 = arith.constant 0 : index
    %c0_56 = arith.constant 0 : index
    %170 = vector.load %arg9[%c0_53, %c0_54, %c0_55, %c0_56] : memref<1x3x16x32xf32, #tpu.memory_space<vmem>>, vector<1x1x16x32xf32>
    %171 = vector.shape_cast %170 : vector<1x1x16x32xf32> to vector<16x32xf32>
    %172 = vector.shape_cast %169 : vector<16x32xf32> to vector<1x1x16x32xf32>
    tpu.vector_store %arg9[%c0_53, %c0_54, %c0_55, %c0_56], %172 {strides = array<i32>} : memref<1x3x16x32xf32, #tpu.memory_space<vmem>>, vector<1x1x16x32xf32>,
    %173 = vector.extract_strided_slice %115 {offsets = [16, 0], sizes = [16, 32], strides = [1, 1]} : vector<48x32xf32> to vector<16x32xf32>
    %174 = vector.extract_strided_slice %121 {offsets = [16, 0], sizes = [16, 32], strides = [1, 1]} : vector<48x32xf32> to vector<16x32xf32>
    %175 = vector.extract_strided_slice %127 {offsets = [16, 0], sizes = [16, 32], strides = [1, 1]} : vector<48x32xf32> to vector<16x32xf32>
    %176 = vector.extract_strided_slice %104 {offsets = [0, 0, 0], sizes = [1, 32, 32], strides = [1, 1, 1]} : vector<3x32x32xf32> to vector<1x32x32xf32>
    %177 = vector.shape_cast %176 : vector<1x32x32xf32> to vector<32x32xf32>
    %cst_57 = arith.constant dense<0.000000e+00> : vector<16x32xf32>
    %178 = tpu.matmul %169, %177, %cst_57 {dimension_numbers = #tpu.dot_dimension_numbers<[1], [0], [0], [1], [0, 0, 1, 1], [], []>} : vector<16x32xf32>, vector<32x32xf32>, vector<16x32xf32> -> vector<16x32xf32>
    %179 = vector.extract_strided_slice %108 {offsets = [0, 0], sizes = [1, 32], strides = [1, 1]} : vector<3x32xf32> to vector<1x32xf32>
    %180 = vector.broadcast %179 : vector<1x32xf32> to vector<16x32xf32>
    %181 = arith.addf %178, %180 : vector<16x32xf32>
    %182 = vector.extract_strided_slice %104 {offsets = [1, 0, 0], sizes = [1, 32, 32], strides = [1, 1, 1]} : vector<3x32x32xf32> to vector<1x32x32xf32>
    %183 = vector.shape_cast %182 : vector<1x32x32xf32> to vector<32x32xf32>
    %cst_58 = arith.constant dense<0.000000e+00> : vector<16x32xf32>
    %184 = tpu.matmul %169, %183, %cst_58 {dimension_numbers = #tpu.dot_dimension_numbers<[1], [0], [0], [1], [0, 0, 1, 1], [], []>} : vector<16x32xf32>, vector<32x32xf32>, vector<16x32xf32> -> vector<16x32xf32>
    %185 = vector.extract_strided_slice %108 {offsets = [1, 0], sizes = [1, 32], strides = [1, 1]} : vector<3x32xf32> to vector<1x32xf32>
    %186 = vector.broadcast %185 : vector<1x32xf32> to vector<16x32xf32>
    %187 = arith.addf %184, %186 : vector<16x32xf32>
    %188 = vector.extract_strided_slice %104 {offsets = [2, 0, 0], sizes = [1, 32, 32], strides = [1, 1, 1]} : vector<3x32x32xf32> to vector<1x32x32xf32>
    %189 = vector.shape_cast %188 : vector<1x32x32xf32> to vector<32x32xf32>
    %cst_59 = arith.constant dense<0.000000e+00> : vector<16x32xf32>
    %190 = tpu.matmul %169, %189, %cst_59 {dimension_numbers = #tpu.dot_dimension_numbers<[1], [0], [0], [1], [0, 0, 1, 1], [], []>} : vector<16x32xf32>, vector<32x32xf32>, vector<16x32xf32> -> vector<16x32xf32>
    %191 = vector.extract_strided_slice %108 {offsets = [2, 0], sizes = [1, 32], strides = [1, 1]} : vector<3x32xf32> to vector<1x32xf32>
    %192 = vector.broadcast %191 : vector<1x32xf32> to vector<16x32xf32>
    %193 = arith.addf %190, %192 : vector<16x32xf32>
    %194 = arith.addf %173, %181 : vector<16x32xf32>
    %195 = arith.negf %194 : vector<16x32xf32>
    %196 = math.exp %195 : vector<16x32xf32>
    %cst_60 = arith.constant 1.000000e+00 : f32
    %197 = vector.broadcast %cst_60 : f32 to vector<16x32xf32>
    %198 = arith.addf %197, %196 : vector<16x32xf32>
    %199 = arith.divf %197, %198 : vector<16x32xf32>
    %200 = arith.addf %174, %187 : vector<16x32xf32>
    %201 = arith.negf %200 : vector<16x32xf32>
    %202 = math.exp %201 : vector<16x32xf32>
    %cst_61 = arith.constant 1.000000e+00 : f32
    %203 = vector.broadcast %cst_61 : f32 to vector<16x32xf32>
    %204 = arith.addf %203, %202 : vector<16x32xf32>
    %205 = arith.divf %203, %204 : vector<16x32xf32>
    %206 = arith.mulf %199, %193 : vector<16x32xf32>
    %207 = arith.addf %175, %206 : vector<16x32xf32>
    %208 = math.tanh %207 : vector<16x32xf32>
    %cst_62 = arith.constant 1.000000e+00 : f32
    %209 = vector.broadcast %cst_62 : f32 to vector<16x32xf32>
    %210 = arith.subf %209, %205 : vector<16x32xf32>
    %211 = arith.mulf %210, %208 : vector<16x32xf32>
    %212 = arith.mulf %205, %169 : vector<16x32xf32>
    %213 = arith.addf %211, %212 : vector<16x32xf32>
    %c0_63 = arith.constant 0 : index
    %c1 = arith.constant 1 : index
    %c0_64 = arith.constant 0 : index
    %c0_65 = arith.constant 0 : index
    %214 = vector.load %arg9[%c0_63, %c1, %c0_64, %c0_65] : memref<1x3x16x32xf32, #tpu.memory_space<vmem>>, vector<1x1x16x32xf32>
    %215 = vector.shape_cast %214 : vector<1x1x16x32xf32> to vector<16x32xf32>
    %216 = vector.shape_cast %213 : vector<16x32xf32> to vector<1x1x16x32xf32>
    tpu.vector_store %arg9[%c0_63, %c1, %c0_64, %c0_65], %216 {strides = array<i32>} : memref<1x3x16x32xf32, #tpu.memory_space<vmem>>, vector<1x1x16x32xf32>,
    %217 = vector.extract_strided_slice %115 {offsets = [32, 0], sizes = [16, 32], strides = [1, 1]} : vector<48x32xf32> to vector<16x32xf32>
    %218 = vector.extract_strided_slice %121 {offsets = [32, 0], sizes = [16, 32], strides = [1, 1]} : vector<48x32xf32> to vector<16x32xf32>
    %219 = vector.extract_strided_slice %127 {offsets = [32, 0], sizes = [16, 32], strides = [1, 1]} : vector<48x32xf32> to vector<16x32xf32>
    %220 = vector.extract_strided_slice %104 {offsets = [0, 0, 0], sizes = [1, 32, 32], strides = [1, 1, 1]} : vector<3x32x32xf32> to vector<1x32x32xf32>
    %221 = vector.shape_cast %220 : vector<1x32x32xf32> to vector<32x32xf32>
    %cst_66 = arith.constant dense<0.000000e+00> : vector<16x32xf32>
    %222 = tpu.matmul %213, %221, %cst_66 {dimension_numbers = #tpu.dot_dimension_numbers<[1], [0], [0], [1], [0, 0, 1, 1], [], []>} : vector<16x32xf32>, vector<32x32xf32>, vector<16x32xf32> -> vector<16x32xf32>
    %223 = vector.extract_strided_slice %108 {offsets = [0, 0], sizes = [1, 32], strides = [1, 1]} : vector<3x32xf32> to vector<1x32xf32>
    %224 = vector.broadcast %223 : vector<1x32xf32> to vector<16x32xf32>
    %225 = arith.addf %222, %224 : vector<16x32xf32>
    %226 = vector.extract_strided_slice %104 {offsets = [1, 0, 0], sizes = [1, 32, 32], strides = [1, 1, 1]} : vector<3x32x32xf32> to vector<1x32x32xf32>
    %227 = vector.shape_cast %226 : vector<1x32x32xf32> to vector<32x32xf32>
    %cst_67 = arith.constant dense<0.000000e+00> : vector<16x32xf32>
    %228 = tpu.matmul %213, %227, %cst_67 {dimension_numbers = #tpu.dot_dimension_numbers<[1], [0], [0], [1], [0, 0, 1, 1], [], []>} : vector<16x32xf32>, vector<32x32xf32>, vector<16x32xf32> -> vector<16x32xf32>
    %229 = vector.extract_strided_slice %108 {offsets = [1, 0], sizes = [1, 32], strides = [1, 1]} : vector<3x32xf32> to vector<1x32xf32>
    %230 = vector.broadcast %229 : vector<1x32xf32> to vector<16x32xf32>
    %231 = arith.addf %228, %230 : vector<16x32xf32>
    %232 = vector.extract_strided_slice %104 {offsets = [2, 0, 0], sizes = [1, 32, 32], strides = [1, 1, 1]} : vector<3x32x32xf32> to vector<1x32x32xf32>
    %233 = vector.shape_cast %232 : vector<1x32x32xf32> to vector<32x32xf32>
    %cst_68 = arith.constant dense<0.000000e+00> : vector<16x32xf32>
    %234 = tpu.matmul %213, %233, %cst_68 {dimension_numbers = #tpu.dot_dimension_numbers<[1], [0], [0], [1], [0, 0, 1, 1], [], []>} : vector<16x32xf32>, vector<32x32xf32>, vector<16x32xf32> -> vector<16x32xf32>
    %235 = vector.extract_strided_slice %108 {offsets = [2, 0], sizes = [1, 32], strides = [1, 1]} : vector<3x32xf32> to vector<1x32xf32>
    %236 = vector.broadcast %235 : vector<1x32xf32> to vector<16x32xf32>
    %237 = arith.addf %234, %236 : vector<16x32xf32>
    %238 = arith.addf %217, %225 : vector<16x32xf32>
    %239 = arith.negf %238 : vector<16x32xf32>
    %240 = math.exp %239 : vector<16x32xf32>
    %cst_69 = arith.constant 1.000000e+00 : f32
    %241 = vector.broadcast %cst_69 : f32 to vector<16x32xf32>
    %242 = arith.addf %241, %240 : vector<16x32xf32>
    %243 = arith.divf %241, %242 : vector<16x32xf32>
    %244 = arith.addf %218, %231 : vector<16x32xf32>
    %245 = arith.negf %244 : vector<16x32xf32>
    %246 = math.exp %245 : vector<16x32xf32>
    %cst_70 = arith.constant 1.000000e+00 : f32
    %247 = vector.broadcast %cst_70 : f32 to vector<16x32xf32>
    %248 = arith.addf %247, %246 : vector<16x32xf32>
    %249 = arith.divf %247, %248 : vector<16x32xf32>
    %250 = arith.mulf %243, %237 : vector<16x32xf32>
    %251 = arith.addf %219, %250 : vector<16x32xf32>
    %252 = math.tanh %251 : vector<16x32xf32>
    %cst_71 = arith.constant 1.000000e+00 : f32
    %253 = vector.broadcast %cst_71 : f32 to vector<16x32xf32>
    %254 = arith.subf %253, %249 : vector<16x32xf32>
    %255 = arith.mulf %254, %252 : vector<16x32xf32>
    %256 = arith.mulf %249, %213 : vector<16x32xf32>
    %257 = arith.addf %255, %256 : vector<16x32xf32>
    %c0_72 = arith.constant 0 : index
    %c2 = arith.constant 2 : index
    %c0_73 = arith.constant 0 : index
    %c0_74 = arith.constant 0 : index
    %258 = vector.load %arg9[%c0_72, %c2, %c0_73, %c0_74] : memref<1x3x16x32xf32, #tpu.memory_space<vmem>>, vector<1x1x16x32xf32>
    %259 = vector.shape_cast %258 : vector<1x1x16x32xf32> to vector<16x32xf32>
    %260 = vector.shape_cast %257 : vector<16x32xf32> to vector<1x1x16x32xf32>
    tpu.vector_store %arg9[%c0_72, %c2, %c0_73, %c0_74], %260 {strides = array<i32>} : memref<1x3x16x32xf32, #tpu.memory_space<vmem>>, vector<1x1x16x32xf32>,
    return
  }
  func.func @transform_0(%arg0: i32) -> (i32, i32) {
    %c0_i32 = arith.constant 0 : i32
    %c0_i32_0 = arith.constant 0 : i32
    %c0_i32_1 = arith.constant 0 : i32
    return %c0_i32, %c0_i32_0 : i32, i32
  }
  func.func @transform_1(%arg0: i32) -> (i32, i32, i32, i32) {
    %c0_i32 = arith.constant 0 : i32
    %c0_i32_0 = arith.constant 0 : i32
    %c0_i32_1 = arith.constant 0 : i32
    %c0_i32_2 = arith.constant 0 : i32
    return %arg0, %c0_i32, %c0_i32_0, %c0_i32_1 : i32, i32, i32, i32
  }
  func.func @transform_2(%arg0: i32) -> (i32, i32, i32) {
    %c0_i32 = arith.constant 0 : i32
    %c0_i32_0 = arith.constant 0 : i32
    %c0_i32_1 = arith.constant 0 : i32
    return %arg0, %c0_i32, %c0_i32_0 : i32, i32, i32
  }
  func.func @transform_3(%arg0: i32) -> (i32, i32, i32) {
    %c0_i32 = arith.constant 0 : i32
    %c0_i32_0 = arith.constant 0 : i32
    %c0_i32_1 = arith.constant 0 : i32
    return %arg0, %c0_i32, %c0_i32_0 : i32, i32, i32
  }
  func.func @transform_4(%arg0: i32) -> (i32, i32, i32, i32) {
    %c0_i32 = arith.constant 0 : i32
    %c0_i32_0 = arith.constant 0 : i32
    %c0_i32_1 = arith.constant 0 : i32
    %c0_i32_2 = arith.constant 0 : i32
    return %arg0, %c0_i32, %c0_i32_0, %c0_i32_1 : i32, i32, i32, i32
  }
  func.func @transform_5(%arg0: i32) -> (i32, i32, i32, i32) {
    %c0_i32 = arith.constant 0 : i32
    %c0_i32_0 = arith.constant 0 : i32
    %c0_i32_1 = arith.constant 0 : i32
    %c0_i32_2 = arith.constant 0 : i32
    return %arg0, %c0_i32, %c0_i32_0, %c0_i32_1 : i32, i32, i32, i32
  }
  func.func @transform_6(%arg0: i32) -> (i32, i32, i32) {
    %c0_i32 = arith.constant 0 : i32
    %c0_i32_0 = arith.constant 0 : i32
    %c0_i32_1 = arith.constant 0 : i32
    return %arg0, %c0_i32, %c0_i32_0 : i32, i32, i32
  }
  func.func @transform_7(%arg0: i32) -> (i32, i32, i32) {
    %c0_i32 = arith.constant 0 : i32
    %c0_i32_0 = arith.constant 0 : i32
    %c0_i32_1 = arith.constant 0 : i32
    return %arg0, %c0_i32, %c0_i32_0 : i32, i32, i32
  }
  func.func @transform_8(%arg0: i32) -> (i32, i32, i32, i32) {
    %c0_i32 = arith.constant 0 : i32
    %c0_i32_0 = arith.constant 0 : i32
    %c0_i32_1 = arith.constant 0 : i32
    %c0_i32_2 = arith.constant 0 : i32
    return %arg0, %c0_i32, %c0_i32_0, %c0_i32_1 : i32, i32, i32, i32
  }
}

</mosaic_0001>

<llo_original>
// kernel: tpu_custom_call.1
$region0: #{tpu_custom_call.1}
  #allocation0 [shape = 'u32[]', space=smem, size = 0x4, offset = 0x4, fixed_abs, tag = 'smem constant byte address 0x4 - core index']
  #allocation1 [shape = 'u32[72,128]{1,0:T(1,128)}', space=vmem, size = 0x9000, scoped, tag = 'internal scratch']
  %s0 = inlined_call_operand.vmem [shape: f32[16,32], index: 0, kind: input, shape index: {}]
  %s1 = inlined_call_operand.hbm [shape: f32[2,3,16,16], index: 1, kind: input, shape index: {}]
  %s2 = inlined_call_operand.hbm [shape: f32[2,32,192], index: 2, kind: input, shape index: {}]
  %s3 = inlined_call_operand.vmem [shape: f32[2,6,32], index: 3, kind: input, shape index: {}]
  %s4 = inlined_call_operand.hbm [shape: f32[2,3,32,32], index: 4, kind: input, shape index: {}]
  %s5 = inlined_call_operand.hbm [shape: f32[2,3,32,32], index: 5, kind: input, shape index: {}]
  %s6 = inlined_call_operand.vmem [shape: f32[2,3,32], index: 6, kind: input, shape index: {}]
  %s7 = inlined_call_operand.vmem [shape: f32[2,3,32], index: 7, kind: input, shape index: {}]
  %s8 = inlined_call_operand.hbm [shape: f32[2,3,16,32], index: 8, kind: output, shape index: {}]
  %s9 = sld [smem:[#allocation0]]
  $region81: #{tpu_custom_call.1} parent=0
    _
  %s11 = ssub.s32 1, %s9
  %s12 = scalar_select 0, %s11, %s9
  $region1: #{tpu_custom_call.1} parent=0
    #allocation2 [shape = 'u8[49152]{0}', space=vmem, size = 0xc000, scoped, tag = 'input window, operand 1']
    #allocation3 [shape = 's32[2]{0}', space=sflag, size = 0x8, scoped, tag = 'scoped memory for tpu_custom_call.1']
    #allocation4 [shape = 's32[2]{0}', space=sflag, size = 0x8, scoped, tag = 'scoped memory for tpu_custom_call.1']
    #allocation5 [shape = 'u8[65536]{0}', space=vmem, size = 0x10000, scoped, tag = 'input window, operand 2']
    #allocation6 [shape = 's32[2]{0}', space=sflag, size = 0x8, scoped, tag = 'scoped memory for tpu_custom_call.1']
    #allocation7 [shape = 'u8[98304]{0}', space=vmem, size = 0x18000, scoped, tag = 'input window, operand 4']
    #allocation8 [shape = 'u8[98304]{0}', space=vmem, size = 0x18000, scoped, tag = 'input window, operand 5']
    #allocation9 [shape = 's32[2]{0}', space=sflag, size = 0x8, scoped, tag = 'scoped memory for tpu_custom_call.1']
    #allocation10 [shape = 'u8[49152]{0}', space=vmem, size = 0xc000, scoped, tag = 'output window, operand 0']
    %13 = vsyncpa [#allocation3], 0
    %s14 = scalar_lea.sflag [#allocation3], 1
    %15 = vsyncpa %s14, 0
    %16 = vsyncpa [#allocation6], 0
    %s17 = scalar_lea.sflag [#allocation6], 1
    %18 = vsyncpa %s17, 0
    %19 = vsyncpa [#allocation9], 0
    %s20 = scalar_lea.sflag [#allocation9], 1
    %21 = vsyncpa %s20, 0
    %22 = vsyncpa [#allocation4], 0
    %s23 = scalar_lea.sflag [#allocation4], 1
    %24 = vsyncpa %s23, 0
    loop: start=0, step=1, limit=4
    $region2: #{tpu_custom_call.1} parent=1 // loop_pre_header
      _
    $region3: #{tpu_custom_call.1} parent=1 // loop_header
      %s26 = sphi 0, %s30
      %p27 = scmp.ge.s32.totalorder %s26, 4
      %s34 = sphi 0, %s34
      %s36 = sphi 0, %s34
      %s37 = sphi 0, %s36
      %s51 = sphi 0, %s37
      %s57 = sphi 0, %s59
      %s60 = sphi 0, %s57
      %s61 = sphi 0, %s60
      %s77 = sphi 0, %s61
      %s83 = sphi 0, %s85
      %s86 = sphi 0, %s83
      %s87 = sphi 0, %s86
      %s103 = sphi 0, %s87
      %s109 = sphi 0, %s111
      %s112 = sphi 0, %s109
      %s113 = sphi 0, %s112
      %s129 = sphi 0, %s113
      %s135 = sphi 0, %s137
      %s138 = sphi 0, %s135
      %s139 = sphi 0, %s138
      %s155 = sphi 0, %s139
      %s161 = sphi 0, %s163
      %s164 = sphi 0, %s161
      %s165 = sphi 0, %s164
      %s181 = sphi 0, %s165
      %s187 = sphi 0, %s189
      %s190 = sphi 0, %s187
      %s191 = sphi 0, %s190
      %s207 = sphi 0, %s191
      %s213 = sphi 0, %s215
      %s216 = sphi 0, %s213
      %s217 = sphi 0, %s216
      %s233 = sphi 0, %s217
      %s239 = sphi 0, %s241
      %s242 = sphi 0, %s239
      %s243 = sphi 0, %s242
      %s259 = sphi 0, %s243
    $region4: #{tpu_custom_call.1} parent=1 // loop_header_branch
      %29 = sbr.rel (%p27) target = $region8
    $region5: #{tpu_custom_call.1} parent=1 // loop_body
      %s31 = ssub.s32 %s26, 1
      %s32 = ssub.s32 %s26, 2
      %s33 = sadd.s32 %s26, 1
      %s35 = sadd.s32 %s34, 1
      %p38 = scmp.eq.s32.totalorder %s26, 1
      %p39 = scmp.ne.s32.totalorder %s34, %s36
      %p40 = scmp.eq.s32.totalorder %s26, 0
      %p41 = por %p39, %p40
      %p42 = scmp.ne.s32.totalorder %s34, %s36
      %p43 = scmp.eq.s32.totalorder %s31, 1
      %p44 = por %p42, %p43
      %p45 = scmp.ne.s32.totalorder %s36, %s37
      %p46 = scmp.eq.s32.totalorder %s31, 0
      %p47 = por %p45, %p46
      %p48 = scmp.ne.s32.totalorder %s36, %s37
      %p49 = scmp.eq.s32.totalorder %s32, 1
      %p50 = por %p48, %p49
      %p52 = scmp.ne.s32.totalorder %s37, %s51
      %p53 = scmp.eq.s32.totalorder %s32, 0
      %p54 = por %p52, %p53
      %s55 = ssub.s32 %s26, %s33
      %p56 = scmp.eq.s32.totalorder %s55, 0
      %s58 = sadd.s32 %s57, 1
      %s59 = scalar_select %p56, %s57, %s58
      %p62 = pneg %p56
      %p63 = scmp.eq.s32.totalorder %s26, 1
      %p64 = por %p62, %p63
      %p65 = scmp.ne.s32.totalorder %s57, %s60
      %p66 = scmp.eq.s32.totalorder %s26, 0
      %p67 = por %p65, %p66
      %p68 = scmp.ne.s32.totalorder %s57, %s60
      %p69 = scmp.eq.s32.totalorder %s31, 1
      %p70 = por %p68, %p69
      %p71 = scmp.ne.s32.totalorder %s60, %s61
      %p72 = scmp.eq.s32.totalorder %s31, 0
      %p73 = por %p71, %p72
      %p74 = scmp.ne.s32.totalorder %s60, %s61
      %p75 = scmp.eq.s32.totalorder %s32, 1
      %p76 = por %p74, %p75
      %p78 = scmp.ne.s32.totalorder %s61, %s77
      %p79 = scmp.eq.s32.totalorder %s32, 0
      %p80 = por %p78, %p79
      %s81 = ssub.s32 %s26, %s33
      %p82 = scmp.eq.s32.totalorder %s81, 0
      %s84 = sadd.s32 %s83, 1
      %s85 = scalar_select %p82, %s83, %s84
      %p88 = pneg %p82
      %p89 = scmp.eq.s32.totalorder %s26, 1
      %p90 = por %p88, %p89
      %p91 = scmp.ne.s32.totalorder %s83, %s86
      %p92 = scmp.eq.s32.totalorder %s26, 0
      %p93 = por %p91, %p92
      %p94 = scmp.ne.s32.totalorder %s83, %s86
      %p95 = scmp.eq.s32.totalorder %s31, 1
      %p96 = por %p94, %p95
      %p97 = scmp.ne.s32.totalorder %s86, %s87
      %p98 = scmp.eq.s32.totalorder %s31, 0
      %p99 = por %p97, %p98
      %p100 = scmp.ne.s32.totalorder %s86, %s87
      %p101 = scmp.eq.s32.totalorder %s32, 1
      %p102 = por %p100, %p101
      %p104 = scmp.ne.s32.totalorder %s87, %s103
      %p105 = scmp.eq.s32.totalorder %s32, 0
      %p106 = por %p104, %p105
      %s107 = ssub.s32 %s26, %s33
      %p108 = scmp.eq.s32.totalorder %s107, 0
      %s110 = sadd.s32 %s109, 1
      %s111 = scalar_select %p108, %s109, %s110
      %p114 = pneg %p108
      %p115 = scmp.eq.s32.totalorder %s26, 1
      %p116 = por %p114, %p115
      %p117 = scmp.ne.s32.totalorder %s109, %s112
      %p118 = scmp.eq.s32.totalorder %s26, 0
      %p119 = por %p117, %p118
      %p120 = scmp.ne.s32.totalorder %s109, %s112
      %p121 = scmp.eq.s32.totalorder %s31, 1
      %p122 = por %p120, %p121
      %p123 = scmp.ne.s32.totalorder %s112, %s113
      %p124 = scmp.eq.s32.totalorder %s31, 0
      %p125 = por %p123, %p124
      %p126 = scmp.ne.s32.totalorder %s112, %s113
      %p127 = scmp.eq.s32.totalorder %s32, 1
      %p128 = por %p126, %p127
      %p130 = scmp.ne.s32.totalorder %s113, %s129
      %p131 = scmp.eq.s32.totalorder %s32, 0
      %p132 = por %p130, %p131
      %s133 = ssub.s32 %s26, %s33
      %p134 = scmp.eq.s32.totalorder %s133, 0
      %s136 = sadd.s32 %s135, 1
      %s137 = scalar_select %p134, %s135, %s136
      %p140 = pneg %p134
      %p141 = scmp.eq.s32.totalorder %s26, 1
      %p142 = por %p140, %p141
      %p143 = scmp.ne.s32.totalorder %s135, %s138
      %p144 = scmp.eq.s32.totalorder %s26, 0
      %p145 = por %p143, %p144
      %p146 = scmp.ne.s32.totalorder %s135, %s138
      %p147 = scmp.eq.s32.totalorder %s31, 1
      %p148 = por %p146, %p147
      %p149 = scmp.ne.s32.totalorder %s138, %s139
      %p150 = scmp.eq.s32.totalorder %s31, 0
      %p151 = por %p149, %p150
      %p152 = scmp.ne.s32.totalorder %s138, %s139
      %p153 = scmp.eq.s32.totalorder %s32, 1
      %p154 = por %p152, %p153
      %p156 = scmp.ne.s32.totalorder %s139, %s155
      %p157 = scmp.eq.s32.totalorder %s32, 0
      %p158 = por %p156, %p157
      %s159 = ssub.s32 %s26, %s33
      %p160 = scmp.eq.s32.totalorder %s159, 0
      %s162 = sadd.s32 %s161, 1
      %s163 = scalar_select %p160, %s161, %s162
      %p166 = pneg %p160
      %p167 = scmp.eq.s32.totalorder %s26, 1
      %p168 = por %p166, %p167
      %p169 = scmp.ne.s32.totalorder %s161, %s164
      %p170 = scmp.eq.s32.totalorder %s26, 0
      %p171 = por %p169, %p170
      %p172 = scmp.ne.s32.totalorder %s161, %s164
      %p173 = scmp.eq.s32.totalorder %s31, 1
      %p174 = por %p172, %p173
      %p175 = scmp.ne.s32.totalorder %s164, %s165
      %p176 = scmp.eq.s32.totalorder %s31, 0
      %p177 = por %p175, %p176
      %p178 = scmp.ne.s32.totalorder %s164, %s165
      %p179 = scmp.eq.s32.totalorder %s32, 1
      %p180 = por %p178, %p179
      %p182 = scmp.ne.s32.totalorder %s165, %s181
      %p183 = scmp.eq.s32.totalorder %s32, 0
      %p184 = por %p182, %p183
      %s185 = ssub.s32 %s26, %s33
      %p186 = scmp.eq.s32.totalorder %s185, 0
      %s188 = sadd.s32 %s187, 1
      %s189 = scalar_select %p186, %s187, %s188
      %p192 = pneg %p186
      %p193 = scmp.eq.s32.totalorder %s26, 1
      %p194 = por %p192, %p193
      %p195 = scmp.ne.s32.totalorder %s187, %s190
      %p196 = scmp.eq.s32.totalorder %s26, 0
      %p197 = por %p195, %p196
      %p198 = scmp.ne.s32.totalorder %s187, %s190
      %p199 = scmp.eq.s32.totalorder %s31, 1
      %p200 = por %p198, %p199
      %p201 = scmp.ne.s32.totalorder %s190, %s191
      %p202 = scmp.eq.s32.totalorder %s31, 0
      %p203 = por %p201, %p202
      %p204 = scmp.ne.s32.totalorder %s190, %s191
      %p205 = scmp.eq.s32.totalorder %s32, 1
      %p206 = por %p204, %p205
      %p208 = scmp.ne.s32.totalorder %s191, %s207
      %p209 = scmp.eq.s32.totalorder %s32, 0
      %p210 = por %p208, %p209
      %s211 = ssub.s32 %s26, %s33
      %p212 = scmp.eq.s32.totalorder %s211, 0
      %s214 = sadd.s32 %s213, 1
      %s215 = scalar_select %p212, %s213, %s214
      %p218 = pneg %p212
      %p219 = scmp.eq.s32.totalorder %s26, 1
      %p220 = por %p218, %p219
      %p221 = scmp.ne.s32.totalorder %s213, %s216
      %p222 = scmp.eq.s32.totalorder %s26, 0
      %p223 = por %p221, %p222
      %p224 = scmp.ne.s32.totalorder %s213, %s216
      %p225 = scmp.eq.s32.totalorder %s31, 1
      %p226 = por %p224, %p225
      %p227 = scmp.ne.s32.totalorder %s216, %s217
      %p228 = scmp.eq.s32.totalorder %s31, 0
      %p229 = por %p227, %p228
      %p230 = scmp.ne.s32.totalorder %s216, %s217
      %p231 = scmp.eq.s32.totalorder %s32, 1
      %p232 = por %p230, %p231
      %p234 = scmp.ne.s32.totalorder %s217, %s233
      %p235 = scmp.eq.s32.totalorder %s32, 0
      %p236 = por %p234, %p235
      %s237 = ssub.s32 %s26, %s33
      %p238 = scmp.eq.s32.totalorder %s237, 0
      %s240 = sadd.s32 %s239, 1
      %s241 = scalar_select %p238, %s239, %s240
      %p244 = pneg %p238
      %p245 = scmp.eq.s32.totalorder %s26, 1
      %p246 = por %p244, %p245
      %p247 = scmp.ne.s32.totalorder %s239, %s242
      %p248 = scmp.eq.s32.totalorder %s26, 0
      %p249 = por %p247, %p248
      %p250 = scmp.ne.s32.totalorder %s239, %s242
      %p251 = scmp.eq.s32.totalorder %s31, 1
      %p252 = por %p250, %p251
      %p253 = scmp.ne.s32.totalorder %s242, %s243
      %p254 = scmp.eq.s32.totalorder %s31, 0
      %p255 = por %p253, %p254
      %p256 = scmp.ne.s32.totalorder %s242, %s243
      %p257 = scmp.eq.s32.totalorder %s32, 1
      %p258 = por %p256, %p257
      %p260 = scmp.ne.s32.totalorder %s243, %s259
      %p261 = scmp.eq.s32.totalorder %s32, 0
      %p262 = por %p260, %p261
      %p263 = scmp.le.s32.totalorder 1, %s26
      %p264 = scmp.lt.s32.totalorder %s26, 3
      %p265 = pnand %p263, %p264
      %p266 = pneg %p265
      // Predicated region
      $region9: #{tpu_custom_call.1} parent=5 // pred_check
        _
      $region10: #{tpu_custom_call.1} parent=5 // pred_check_branch
        %268 = sbr.rel (%p265) target = $region12
      $region11: #{tpu_custom_call.1} parent=5 // pred_region
        %s269 = ssub.s32 %s26, 1
        // Predicated region
        $region13: #{tpu_custom_call.1} parent=11 // pred_check
          %p270 = pneg %p47
        $region14: #{tpu_custom_call.1} parent=11 // pred_check_branch
          %272 = sbr.rel (%p270) target = $region16
        $region15: #{tpu_custom_call.1} parent=11 // pred_region
          _
        $region16: #{tpu_custom_call.1} parent=11 // pred_fallthru
          _
      $region12: #{tpu_custom_call.1} parent=5 // pred_fallthru
        _
      %p273 = scmp.lt.s32.totalorder %s26, 2
      // Predicated region
      $region17: #{tpu_custom_call.1} parent=5 // pred_check
        %p274 = pneg %p273
      $region18: #{tpu_custom_call.1} parent=5 // pred_check_branch
        %276 = sbr.rel (%p274) target = $region20
      $region19: #{tpu_custom_call.1} parent=5 // pred_region
        // Predicated region
        $region21: #{tpu_custom_call.1} parent=19 // pred_check
          %p277 = pneg %p67
        $region22: #{tpu_custom_call.1} parent=19 // pred_check_branch
          %279 = sbr.rel (%p277) target = $region24
        $region23: #{tpu_custom_call.1} parent=19 // pred_region
          %s280 = sand.u32 %s57, 1
          %s281 = scalar_lea.sflag [#allocation3], %s280
          %s282 = sand.u32 %s57, 1
          %s283 = smul.addr %s282, 48
          %s284 = scalar_lea.vmem [#allocation2], %s283
          %286 = vsyncadd %s281, 0
          %s287 = smul.addr %s26, 6
          %s288 = smul.addr %s287, 8
          %s289 = scalar_lea.hbm %s1, %s288
          %s290 = sshll.u32 %s289, 4
          %s291 = int_to_ptr.hbm [resolvable:$true] %s290
          %s292 = sshll.u32 %s284, 4
          %s293 = int_to_ptr.vmem [resolvable:$true] %s292
          %298 = dma.hbm_to_vmem [thread:$0]  %s291, 768, %s293, %s281, 128, 128, 8
        $region24: #{tpu_custom_call.1} parent=19 // pred_fallthru
          _
        // Predicated region
        $region25: #{tpu_custom_call.1} parent=19 // pred_check
          %p299 = pneg %p93
        $region26: #{tpu_custom_call.1} parent=19 // pred_check_branch
          %301 = sbr.rel (%p299) target = $region28
        $region27: #{tpu_custom_call.1} parent=19 // pred_region
          %s302 = sand.u32 %s26, 1
          %s303 = scalar_lea.sflag [#allocation6], %s302
          %s304 = sand.u32 %s83, 1
          %s305 = smul.addr %s304, 64
          %s306 = scalar_lea.vmem [#allocation5], %s305
          %308 = vsyncadd %s303, 0
          %s309 = smul.addr %s26, 8
          %s310 = smul.addr %s309, 8
          %s311 = scalar_lea.hbm %s2, %s310
          %s312 = sshll.u32 %s311, 4
          %s313 = int_to_ptr.hbm [resolvable:$true] %s312
          %s314 = sshll.u32 %s306, 4
          %s315 = int_to_ptr.vmem [resolvable:$true] %s314
          %320 = dma.hbm_to_vmem [thread:$0]  %s313, 1024, %s315, %s303, 256, 256, 16
        $region28: #{tpu_custom_call.1} parent=19 // pred_fallthru
          _
        // Predicated region
        $region29: #{tpu_custom_call.1} parent=19 // pred_check
          %p321 = pneg %p119
        $region30: #{tpu_custom_call.1} parent=19 // pred_check_branch
          %323 = sbr.rel (%p321) target = $region32
        $region31: #{tpu_custom_call.1} parent=19 // pred_region
          %p324 = scmp.lt.s32.totalorder %s26, 1
          %s325 = scalar_select %p324, %s26, 1
          %s326 = smul.addr %s325, 8
          %s327 = scalar_lea.vmem %s3, %s326
        $region32: #{tpu_custom_call.1} parent=19 // pred_fallthru
          _
        // Predicated region
        $region33: #{tpu_custom_call.1} parent=19 // pred_check
          %p328 = pneg %p145
        $region34: #{tpu_custom_call.1} parent=19 // pred_check_branch
          %330 = sbr.rel (%p328) target = $region36
        $region35: #{tpu_custom_call.1} parent=19 // pred_region
          %s331 = sand.u32 %s26, 1
          %s332 = scalar_lea.sflag [#allocation6], %s331
          %s333 = sand.u32 %s135, 1
          %s334 = smul.addr %s333, 96
          %s335 = scalar_lea.vmem [#allocation7], %s334
          %337 = vsyncadd %s332, 0
          %s338 = smul.addr %s26, 12
          %s339 = smul.addr %s338, 8
          %s340 = scalar_lea.hbm %s4, %s339
          %s341 = sshll.u32 %s340, 4
          %s342 = int_to_ptr.hbm [resolvable:$true] %s341
          %s343 = sshll.u32 %s335, 4
          %s344 = int_to_ptr.vmem [resolvable:$true] %s343
          %349 = dma.hbm_to_vmem [thread:$0]  %s342, 1536, %s344, %s332, 128, 128, 8
        $region36: #{tpu_custom_call.1} parent=19 // pred_fallthru
          _
        // Predicated region
        $region37: #{tpu_custom_call.1} parent=19 // pred_check
          %p350 = pneg %p171
        $region38: #{tpu_custom_call.1} parent=19 // pred_check_branch
          %352 = sbr.rel (%p350) target = $region40
        $region39: #{tpu_custom_call.1} parent=19 // pred_region
          %s353 = sand.u32 %s161, 1
          %s354 = scalar_lea.sflag [#allocation9], %s353
          %s355 = sand.u32 %s161, 1
          %s356 = smul.addr %s355, 96
          %s357 = scalar_lea.vmem [#allocation8], %s356
          %359 = vsyncadd %s354, 0
          %s360 = smul.addr %s26, 12
          %s361 = smul.addr %s360, 8
          %s362 = scalar_lea.hbm %s5, %s361
          %s363 = sshll.u32 %s362, 4
          %s364 = int_to_ptr.hbm [resolvable:$true] %s363
          %s365 = sshll.u32 %s357, 4
          %s366 = int_to_ptr.vmem [resolvable:$true] %s365
          %371 = dma.hbm_to_vmem [thread:$0]  %s364, 1536, %s366, %s354, 128, 128, 8
        $region40: #{tpu_custom_call.1} parent=19 // pred_fallthru
          _
        // Predicated region
        $region41: #{tpu_custom_call.1} parent=19 // pred_check
          %p372 = pneg %p197
        $region42: #{tpu_custom_call.1} parent=19 // pred_check_branch
          %374 = sbr.rel (%p372) target = $region44
        $region43: #{tpu_custom_call.1} parent=19 // pred_region
          %p375 = scmp.lt.s32.totalorder %s26, 1
          %s376 = scalar_select %p375, %s26, 1
          %s377 = smul.addr %s376, 4
          %s378 = scalar_lea.vmem %s6, %s377
        $region44: #{tpu_custom_call.1} parent=19 // pred_fallthru
          _
        // Predicated region
        $region45: #{tpu_custom_call.1} parent=19 // pred_check
          %p379 = pneg %p223
        $region46: #{tpu_custom_call.1} parent=19 // pred_check_branch
          %381 = sbr.rel (%p379) target = $region48
        $region47: #{tpu_custom_call.1} parent=19 // pred_region
          %p382 = scmp.lt.s32.totalorder %s26, 1
          %s383 = scalar_select %p382, %s26, 1
          %s384 = smul.addr %s383, 4
          %s385 = scalar_lea.vmem %s7, %s384
        $region48: #{tpu_custom_call.1} parent=19 // pred_fallthru
          _
      $region20: #{tpu_custom_call.1} parent=5 // pred_fallthru
        _
      %p386 = scmp.le.s32.totalorder 1, %s26
      %p387 = scmp.lt.s32.totalorder %s26, 3
      %p388 = pnand %p386, %p387
      %p389 = pneg %p388
      // Predicated region
      $region49: #{tpu_custom_call.1} parent=5 // pred_check
        _
      $region50: #{tpu_custom_call.1} parent=5 // pred_check_branch
        %391 = sbr.rel (%p388) target = $region52
      $region51: #{tpu_custom_call.1} parent=5 // pred_region
        %s392 = ssub.s32 %s26, 1
        %s393 = sand.u32 %s60, 1
        %s394 = scalar_lea.sflag [#allocation3], %s393
        %s395 = sand.u32 %s60, 1
        %s396 = smul.addr %s395, 48
        %s397 = scalar_lea.vmem [#allocation2], %s396
        // Predicated region
        $region53: #{tpu_custom_call.1} parent=51 // pred_check
          %p398 = pneg %p73
        $region54: #{tpu_custom_call.1} parent=51 // pred_check_branch
          %400 = sbr.rel (%p398) target = $region56
        $region55: #{tpu_custom_call.1} parent=51 // pred_region
          %402 = dma.done %s394, 768
        $region56: #{tpu_custom_call.1} parent=51 // pred_fallthru
          _
        %s403 = sand.u32 %s31, 1
        %s404 = scalar_lea.sflag [#allocation6], %s403
        %s405 = sand.u32 %s86, 1
        %s406 = smul.addr %s405, 64
        %s407 = scalar_lea.vmem [#allocation5], %s406
        // Predicated region
        $region57: #{tpu_custom_call.1} parent=51 // pred_check
          %p408 = pneg %p99
        $region58: #{tpu_custom_call.1} parent=51 // pred_check_branch
          %410 = sbr.rel (%p408) target = $region60
        $region59: #{tpu_custom_call.1} parent=51 // pred_region
          %412 = dma.done %s404, 1024
        $region60: #{tpu_custom_call.1} parent=51 // pred_fallthru
          _
        %s413 = sand.u32 %s31, 1
        %s414 = scalar_lea.sflag [#allocation6], %s413
        %s415 = sand.u32 %s138, 1
        %s416 = smul.addr %s415, 96
        %s417 = scalar_lea.vmem [#allocation7], %s416
        // Predicated region
        $region61: #{tpu_custom_call.1} parent=51 // pred_check
          %p418 = pneg %p151
        $region62: #{tpu_custom_call.1} parent=51 // pred_check_branch
          %420 = sbr.rel (%p418) target = $region64
        $region63: #{tpu_custom_call.1} parent=51 // pred_region
          %422 = dma.done %s414, 1536
        $region64: #{tpu_custom_call.1} parent=51 // pred_fallthru
          _
        %s423 = sand.u32 %s164, 1
        %s424 = scalar_lea.sflag [#allocation9], %s423
        %s425 = sand.u32 %s164, 1
        %s426 = smul.addr %s425, 96
        %s427 = scalar_lea.vmem [#allocation8], %s426
        // Predicated region
        $region65: #{tpu_custom_call.1} parent=51 // pred_check
          %p428 = pneg %p177
        $region66: #{tpu_custom_call.1} parent=51 // pred_check_branch
          %430 = sbr.rel (%p428) target = $region68
        $region67: #{tpu_custom_call.1} parent=51 // pred_region
          %432 = dma.done %s424, 1536
        $region68: #{tpu_custom_call.1} parent=51 // pred_fallthru
          _
        %p433 = pneg %p47
        %p434 = pneg %p44
        %s435 = sand.u32 %s60, 1
        %s436 = scalar_lea.sflag [#allocation3], %s435
        %s437 = sand.u32 %s60, 1
        %s438 = smul.addr %s437, 48
        %s439 = scalar_lea.vmem [#allocation2], %s438
        %p440 = pneg %p73
        %p441 = pneg %p70
        %s442 = sand.u32 %s31, 1
        %s443 = scalar_lea.sflag [#allocation6], %s442
        %s444 = sand.u32 %s86, 1
        %s445 = smul.addr %s444, 64
        %s446 = scalar_lea.vmem [#allocation5], %s445
        %p447 = pneg %p99
        %p448 = pneg %p96
        %p449 = scmp.lt.s32.totalorder %s31, 1
        %s450 = scalar_select %p449, %s31, 1
        %s451 = smul.addr %s450, 8
        %s452 = scalar_lea.vmem %s3, %s451
        %p453 = pneg %p125
        %p454 = pneg %p122
        %s455 = sand.u32 %s31, 1
        %s456 = scalar_lea.sflag [#allocation6], %s455
        %s457 = sand.u32 %s138, 1
        %s458 = smul.addr %s457, 96
        %s459 = scalar_lea.vmem [#allocation7], %s458
        %p460 = pneg %p151
        %p461 = pneg %p148
        %s462 = sand.u32 %s164, 1
        %s463 = scalar_lea.sflag [#allocation9], %s462
        %s464 = sand.u32 %s164, 1
        %s465 = smul.addr %s464, 96
        %s466 = scalar_lea.vmem [#allocation8], %s465
        %p467 = pneg %p177
        %p468 = pneg %p174
        %p469 = scmp.lt.s32.totalorder %s31, 1
        %s470 = scalar_select %p469, %s31, 1
        %s471 = smul.addr %s470, 4
        %s472 = scalar_lea.vmem %s6, %s471
        %p473 = pneg %p203
        %p474 = pneg %p200
        %p475 = scmp.lt.s32.totalorder %s31, 1
        %s476 = scalar_select %p475, %s31, 1
        %s477 = smul.addr %s476, 4
        %s478 = scalar_lea.vmem %s7, %s477
        %p479 = pneg %p229
        %p480 = pneg %p226
        %p481 = pneg %p255
        %p482 = pneg %p252
        %s483 = sand.u32 %s242, 1
        %s484 = scalar_lea.sflag [#allocation4], %s483
        %s485 = sand.u32 %s242, 1
        %s486 = smul.addr %s485, 48
        %s487 = scalar_lea.vmem [#allocation10], %s486
        %p488 = scmp.lt.s32.totalorder %s31, 1
        %s489 = scalar_select %p488, %s31, 1
        %s490 = smul.addr %s489, 8
        %s491 = scalar_lea.vmem %s3, %s490
        %p492 = scmp.lt.s32.totalorder %s31, 1
        %s493 = scalar_select %p492, %s31, 1
        %s494 = smul.addr %s493, 4
        %s495 = scalar_lea.vmem %s6, %s494
        %p496 = scmp.lt.s32.totalorder %s31, 1
        %s497 = scalar_select %p496, %s31, 1
        %s498 = smul.addr %s497, 4
        %s499 = scalar_lea.vmem %s7, %s498
        %v500 = vld [vmem:[%s0] sm:$0xff]
        %v501 = vld [vmem:[%s0 + $0x8] sm:$0xff]
        %v502 = vld [vmem:[%s397] sm:$0xff]
        %v503 = vld [vmem:[%s397 + $0x8] sm:$0xff]
        %v504 = vld [vmem:[%s397 + $0x10] sm:$0xff]
        %v505 = vld [vmem:[%s397 + $0x18] sm:$0xff]
        %v506 = vld [vmem:[%s397 + $0x20] sm:$0xff]
        %v507 = vld [vmem:[%s397 + $0x28] sm:$0xff]
        %v508 = vld [vmem:[%s407] sm:$0xff]
        %v509 = vld [vmem:[%s407 + $0x8] sm:$0xff]
        %v510 = vld [vmem:[%s407 + $0x10] sm:$0xff]
        %v511 = vld [vmem:[%s407 + $0x18] sm:$0xff]
        %v512 = vld [vmem:[%s407 + $0x20] sm:$0xff]
        %v513 = vld [vmem:[%s407 + $0x28] sm:$0xff]
        %v514 = vld [vmem:[%s407 + $0x30] sm:$0xff]
        %v515 = vld [vmem:[%s407 + $0x38] sm:$0xff]
        %v516 = vld [vmem:[%s491] sm:$0x3f]
        %vm517 = vcmask 261120
        %v519 = vsel %vm517, %v500, 0
        %v522 = vsel %vm517, %v501, 0
        %524 = vmatpush.msra.mxu0 0.0
        %525 = vmatpush.msra.mxu0 0.0
        %526 = vmatpush.msra.mxu0 0.0
        %527 = vmatpush.msra.mxu0 0.0
        %528 = vmatpush.msra.mxu0 0.0
        %529 = vmatpush.msra.mxu0 0.0
        %530 = vmatpush.msra.mxu0 0.0
        %531 = vmatpush.msra.mxu0 0.0
        %532 = vmatpush.msra.mxu0 0.0
        %533 = vmatpush.msra.mxu0 0.0
        %534 = vmatpush.msra.mxu0 0.0
        %535 = vmatpush.msra.mxu0 0.0
        %536 = vmatpush.msra.mxu0 %v514
        %537 = vmatpush.msra.mxu0 %v512
        %538 = vmatpush.msra.mxu0 %v510
        %539 = vmatpush.msra.mxu0 %v508
        %540 = vmatmul.f32.gmra.mxu0 %v519
        %v541 = vpop.f32.mrf.mxu0
        %v542 = vadd.f32 0.0, %v541
        %543 = vmatmul.f32.gmra.mxu0 %v522
        %v544 = vpop.f32.mrf.mxu0
        %v545 = vadd.f32 0.0, %v544
        %546 = vdwg.mxu0
        %547 = vmatpush.msra.mxu0 0.0
        %548 = vmatpush.msra.mxu0 0.0
        %549 = vmatpush.msra.mxu0 0.0
        %550 = vmatpush.msra.mxu0 0.0
        %551 = vmatpush.msra.mxu0 0.0
        %552 = vmatpush.msra.mxu0 0.0
        %553 = vmatpush.msra.mxu0 0.0
        %554 = vmatpush.msra.mxu0 0.0
        %555 = vmatpush.msra.mxu0 0.0
        %556 = vmatpush.msra.mxu0 0.0
        %557 = vmatpush.msra.mxu0 0.0
        %558 = vmatpush.msra.mxu0 0.0
        %559 = vmatpush.msra.mxu0 %v515
        %560 = vmatpush.msra.mxu0 %v513
        %561 = vmatpush.msra.mxu0 %v511
        %562 = vmatpush.msra.mxu0 %v509
        %563 = vmatmul.f32.gmra.mxu0 %v519
        %v564 = vpop.f32.mrf.mxu0
        %v565 = vadd.f32 0.0, %v564
        %566 = vmatmul.f32.gmra.mxu0 %v522
        %v567 = vpop.f32.mrf.mxu0
        %v568 = vadd.f32 0.0, %v567
        %569 = vdwg.mxu0
        %vm570 = vcmask 130048
        %v572 = vsel %vm570, %v502, 0
        %v575 = vsel %vm570, %v503, 0
        %577 = vmatpush.msra.mxu0 0.0
        %578 = vmatpush.msra.mxu0 0.0
        %579 = vmatpush.msra.mxu0 0.0
        %580 = vmatpush.msra.mxu0 0.0
        %581 = vmatpush.msra.mxu0 0.0
        %582 = vmatpush.msra.mxu0 0.0
        %583 = vmatpush.msra.mxu0 0.0
        %584 = vmatpush.msra.mxu0 0.0
        %585 = vmatpush.msra.mxu0 0.0
        %586 = vmatpush.msra.mxu0 0.0
        %587 = vmatpush.msra.mxu0 0.0
        %588 = vmatpush.msra.mxu0 0.0
        %589 = vmatpush.msra.mxu0 0.0
        %590 = vmatpush.msra.mxu0 0.0
        %591 = vmatpush.msra.mxu0 %v545
        %592 = vmatpush.msra.mxu0 %v542
        %593 = vmatmul.f32.gmra.mxu0 %v572
        %v594 = vpop.f32.mrf.mxu0
        %v595 = vadd.f32 0.0, %v594
        %596 = vmatmul.f32.gmra.mxu0 %v575
        %v597 = vpop.f32.mrf.mxu0
        %v598 = vadd.f32 0.0, %v597
        %599 = vdwg.mxu0
        %v600 = vperm.slane %v516, 0
        %v601 = vadd.f32 %v595, %v600
        %v602 = vadd.f32 %v598, %v600
        %v603 = vmul.f32 %v601, %v601
        %v604 = vmul.f32 %v602, %v602
        %v605 = vsel %vm517, %v603, 0.0
        %606 = vadd.xlane.f32.xlu0 %v605
        %v607 = vpop.xlane.xlu0 %606
        %v608 = vsel %vm517, %v604, 0.0
        %609 = vadd.xlane.f32.xlu0 %v608
        %v610 = vpop.xlane.xlu0 %609
        %v611 = vmax.f32 %v607, 1e-24
        %v612 = vmax.f32 %v610, 1e-24
        %v613 = vrsqrt.pop %v611
        %v614 = vmul.f32 %v613, %v611
        %v615 = vmul.f32 %v614, %v613
        %v616 = vmul.f32 0.5, %v615
        %v617 = vsub.f32 1.5, %v616
        %v618 = vmul.f32 %v613, %v617
        %vm619 = vweird.f32 %v611
        %vm620 = vweird.f32 %v613
        %vm621 = vmor %vm619, %vm620
        %v622 = vsel %vm621, %v613, %v618
        %v623 = vrsqrt.pop %v612
        %v624 = vmul.f32 %v623, %v612
        %v625 = vmul.f32 %v624, %v623
        %v626 = vmul.f32 0.5, %v625
        %v627 = vsub.f32 1.5, %v626
        %v628 = vmul.f32 %v623, %v627
        %vm629 = vweird.f32 %v612
        %vm630 = vweird.f32 %v623
        %vm631 = vmor %vm629, %vm630
        %v632 = vsel %vm631, %v623, %v628
        %v633 = vmul.f32 %v601, %v622
        %v634 = vmul.f32 %v602, %v632
        %v635 = vadd.f32 %v633, 0.0
        %v636 = vadd.f32 %v634, 0.0
        %v637 = vperm.slane %v516, 1
        %639 = vrot.lane.b32.xlu0 %v637, 32
        %v640 = vpop.permute.xlu0 %639
        %v642 = vadd.f32 %v595, %v640
        %v643 = vadd.f32 %v598, %v640
        %v644 = vmul.f32 %v642, %v642
        %v645 = vmul.f32 %v643, %v643
        %648 = vrot.lane.b32.xlu0 %v644, 96
        %v649 = vpop.permute.xlu0 %648
        %650 = vrot.lane.b32.xlu0 %v645, 96
        %v651 = vpop.permute.xlu0 %650
        %v654 = vsel %vm517, %v649, 0.0
        %655 = vadd.xlane.f32.xlu0 %v654
        %v656 = vpop.xlane.xlu0 %655
        %v657 = vsel %vm517, %v651, 0.0
        %658 = vadd.xlane.f32.xlu0 %v657
        %v659 = vpop.xlane.xlu0 %658
        %v660 = vmax.f32 %v656, 1e-24
        %v661 = vmax.f32 %v659, 1e-24
        %v662 = vrsqrt.pop %v660
        %v663 = vmul.f32 %v662, %v660
        %v664 = vmul.f32 %v663, %v662
        %v665 = vmul.f32 0.5, %v664
        %v666 = vsub.f32 1.5, %v665
        %v667 = vmul.f32 %v662, %v666
        %vm668 = vweird.f32 %v660
        %vm669 = vweird.f32 %v662
        %vm670 = vmor %vm668, %vm669
        %v671 = vsel %vm670, %v662, %v667
        %v672 = vrsqrt.pop %v661
        %v673 = vmul.f32 %v672, %v661
        %v674 = vmul.f32 %v673, %v672
        %v675 = vmul.f32 0.5, %v674
        %v676 = vsub.f32 1.5, %v675
        %v677 = vmul.f32 %v672, %v676
        %vm678 = vweird.f32 %v661
        %vm679 = vweird.f32 %v672
        %vm680 = vmor %vm678, %vm679
        %v681 = vsel %vm680, %v672, %v677
        %v682 = vmul.f32 %v642, %v671
        %v683 = vmul.f32 %v643, %v681
        %686 = vrot.lane.b32.xlu0 %v682, 96
        %v687 = vpop.permute.xlu0 %686
        %688 = vrot.lane.b32.xlu0 %v683, 96
        %v689 = vpop.permute.xlu0 %688
        %v692 = vadd.f32 %v635, %v687
        %v693 = vadd.f32 %v636, %v689
        %696 = vrot.lane.b32.xlu0 %v542, 64
        %v697 = vpop.permute.xlu0 %696
        %698 = vrot.lane.b32.xlu0 %v545, 64
        %v699 = vpop.permute.xlu0 %698
        %v703 = vsel %vm570, %v504, 0
        %v706 = vsel %vm570, %v505, 0
        %708 = vmatpush.msra.mxu0 0.0
        %709 = vmatpush.msra.mxu0 0.0
        %710 = vmatpush.msra.mxu0 0.0
        %711 = vmatpush.msra.mxu0 0.0
        %712 = vmatpush.msra.mxu0 0.0
        %713 = vmatpush.msra.mxu0 0.0
        %714 = vmatpush.msra.mxu0 0.0
        %715 = vmatpush.msra.mxu0 0.0
        %716 = vmatpush.msra.mxu0 0.0
        %717 = vmatpush.msra.mxu0 0.0
        %718 = vmatpush.msra.mxu0 0.0
        %719 = vmatpush.msra.mxu0 0.0
        %720 = vmatpush.msra.mxu0 0.0
        %721 = vmatpush.msra.mxu0 0.0
        %722 = vmatpush.msra.mxu0 %v699
        %723 = vmatpush.msra.mxu0 %v697
        %724 = vmatmul.f32.gmra.mxu0 %v703
        %v725 = vpop.f32.mrf.mxu0
        %v726 = vadd.f32 0.0, %v725
        %727 = vmatmul.f32.gmra.mxu0 %v706
        %v728 = vpop.f32.mrf.mxu0
        %v729 = vadd.f32 0.0, %v728
        %730 = vdwg.mxu0
        %v731 = vperm.slane %v516, 2
        %v732 = vadd.f32 %v726, %v731
        %v733 = vadd.f32 %v729, %v731
        %v734 = vmul.f32 %v732, %v732
        %v735 = vmul.f32 %v733, %v733
        %v736 = vsel %vm517, %v734, 0.0
        %737 = vadd.xlane.f32.xlu0 %v736
        %v738 = vpop.xlane.xlu0 %737
        %v739 = vsel %vm517, %v735, 0.0
        %740 = vadd.xlane.f32.xlu0 %v739
        %v741 = vpop.xlane.xlu0 %740
        %v742 = vmax.f32 %v738, 1e-24
        %v743 = vmax.f32 %v741, 1e-24
        %v744 = vrsqrt.pop %v742
        %v745 = vmul.f32 %v744, %v742
        %v746 = vmul.f32 %v745, %v744
        %v747 = vmul.f32 0.5, %v746
        %v748 = vsub.f32 1.5, %v747
        %v749 = vmul.f32 %v744, %v748
        %vm750 = vweird.f32 %v742
        %vm751 = vweird.f32 %v744
        %vm752 = vmor %vm750, %vm751
        %v753 = vsel %vm752, %v744, %v749
        %v754 = vrsqrt.pop %v743
        %v755 = vmul.f32 %v754, %v743
        %v756 = vmul.f32 %v755, %v754
        %v757 = vmul.f32 0.5, %v756
        %v758 = vsub.f32 1.5, %v757
        %v759 = vmul.f32 %v754, %v758
        %vm760 = vweird.f32 %v743
        %vm761 = vweird.f32 %v754
        %vm762 = vmor %vm760, %vm761
        %v763 = vsel %vm762, %v754, %v759
        %v764 = vmul.f32 %v732, %v753
        %v765 = vmul.f32 %v733, %v763
        %v766 = vadd.f32 %v764, 0.0
        %v767 = vadd.f32 %v765, 0.0
        %v768 = vperm.slane %v516, 3
        %770 = vrot.lane.b32.xlu0 %v768, 32
        %v771 = vpop.permute.xlu0 %770
        %v773 = vadd.f32 %v726, %v771
        %v774 = vadd.f32 %v729, %v771
        %v775 = vmul.f32 %v773, %v773
        %v776 = vmul.f32 %v774, %v774
        %779 = vrot.lane.b32.xlu0 %v775, 96
        %v780 = vpop.permute.xlu0 %779
        %781 = vrot.lane.b32.xlu0 %v776, 96
        %v782 = vpop.permute.xlu0 %781
        %v785 = vsel %vm517, %v780, 0.0
        %786 = vadd.xlane.f32.xlu0 %v785
        %v787 = vpop.xlane.xlu0 %786
        %v788 = vsel %vm517, %v782, 0.0
        %789 = vadd.xlane.f32.xlu0 %v788
        %v790 = vpop.xlane.xlu0 %789
        %v791 = vmax.f32 %v787, 1e-24
        %v792 = vmax.f32 %v790, 1e-24
        %v793 = vrsqrt.pop %v791
        %v794 = vmul.f32 %v793, %v791
        %v795 = vmul.f32 %v794, %v793
        %v796 = vmul.f32 0.5, %v795
        %v797 = vsub.f32 1.5, %v796
        %v798 = vmul.f32 %v793, %v797
        %vm799 = vweird.f32 %v791
        %vm800 = vweird.f32 %v793
        %vm801 = vmor %vm799, %vm800
        %v802 = vsel %vm801, %v793, %v798
        %v803 = vrsqrt.pop %v792
        %v804 = vmul.f32 %v803, %v792
        %v805 = vmul.f32 %v804, %v803
        %v806 = vmul.f32 0.5, %v805
        %v807 = vsub.f32 1.5, %v806
        %v808 = vmul.f32 %v803, %v807
        %vm809 = vweird.f32 %v792
        %vm810 = vweird.f32 %v803
        %vm811 = vmor %vm809, %vm810
        %v812 = vsel %vm811, %v803, %v808
        %v813 = vmul.f32 %v773, %v802
        %v814 = vmul.f32 %v774, %v812
        %817 = vrot.lane.b32.xlu0 %v813, 96
        %v818 = vpop.permute.xlu0 %817
        %819 = vrot.lane.b32.xlu0 %v814, 96
        %v820 = vpop.permute.xlu0 %819
        %v823 = vadd.f32 %v766, %v818
        %v824 = vadd.f32 %v767, %v820
        %v826 = vsel %vm570, %v506, 0
        %v829 = vsel %vm570, %v507, 0
        %831 = vmatpush.msra.mxu0 0.0
        %832 = vmatpush.msra.mxu0 0.0
        %833 = vmatpush.msra.mxu0 0.0
        %834 = vmatpush.msra.mxu0 0.0
        %835 = vmatpush.msra.mxu0 0.0
        %836 = vmatpush.msra.mxu0 0.0
        %837 = vmatpush.msra.mxu0 0.0
        %838 = vmatpush.msra.mxu0 0.0
        %839 = vmatpush.msra.mxu0 0.0
        %840 = vmatpush.msra.mxu0 0.0
        %841 = vmatpush.msra.mxu0 0.0
        %842 = vmatpush.msra.mxu0 0.0
        %843 = vmatpush.msra.mxu0 0.0
        %844 = vmatpush.msra.mxu0 0.0
        %845 = vmatpush.msra.mxu0 %v568
        %846 = vmatpush.msra.mxu0 %v565
        %847 = vmatmul.f32.gmra.mxu0 %v826
        %v848 = vpop.f32.mrf.mxu0
        %v849 = vadd.f32 0.0, %v848
        %850 = vmatmul.f32.gmra.mxu0 %v829
        %v851 = vpop.f32.mrf.mxu0
        %v852 = vadd.f32 0.0, %v851
        %853 = vdwg.mxu0
        %v854 = vperm.slane %v516, 4
        %v855 = vadd.f32 %v849, %v854
        %v856 = vadd.f32 %v852, %v854
        %v857 = vmul.f32 %v855, %v855
        %v858 = vmul.f32 %v856, %v856
        %v859 = vsel %vm517, %v857, 0.0
        %860 = vadd.xlane.f32.xlu0 %v859
        %v861 = vpop.xlane.xlu0 %860
        %v862 = vsel %vm517, %v858, 0.0
        %863 = vadd.xlane.f32.xlu0 %v862
        %v864 = vpop.xlane.xlu0 %863
        %v865 = vmax.f32 %v861, 1e-24
        %v866 = vmax.f32 %v864, 1e-24
        %v867 = vrsqrt.pop %v865
        %v868 = vmul.f32 %v867, %v865
        %v869 = vmul.f32 %v868, %v867
        %v870 = vmul.f32 0.5, %v869
        %v871 = vsub.f32 1.5, %v870
        %v872 = vmul.f32 %v867, %v871
        %vm873 = vweird.f32 %v865
        %vm874 = vweird.f32 %v867
        %vm875 = vmor %vm873, %vm874
        %v876 = vsel %vm875, %v867, %v872
        %v877 = vrsqrt.pop %v866
        %v878 = vmul.f32 %v877, %v866
        %v879 = vmul.f32 %v878, %v877
        %v880 = vmul.f32 0.5, %v879
        %v881 = vsub.f32 1.5, %v880
        %v882 = vmul.f32 %v877, %v881
        %vm883 = vweird.f32 %v866
        %vm884 = vweird.f32 %v877
        %vm885 = vmor %vm883, %vm884
        %v886 = vsel %vm885, %v877, %v882
        %v887 = vmul.f32 %v855, %v876
        %v888 = vmul.f32 %v856, %v886
        %v889 = vadd.f32 %v887, 0.0
        %v890 = vadd.f32 %v888, 0.0
        %v891 = vperm.slane %v516, 5
        %893 = vrot.lane.b32.xlu0 %v891, 32
        %v894 = vpop.permute.xlu0 %893
        %v896 = vadd.f32 %v849, %v894
        %v897 = vadd.f32 %v852, %v894
        %v898 = vmul.f32 %v896, %v896
        %v899 = vmul.f32 %v897, %v897
        %902 = vrot.lane.b32.xlu0 %v898, 96
        %v903 = vpop.permute.xlu0 %902
        %904 = vrot.lane.b32.xlu0 %v899, 96
        %v905 = vpop.permute.xlu0 %904
        %v908 = vsel %vm517, %v903, 0.0
        %909 = vadd.xlane.f32.xlu0 %v908
        %v910 = vpop.xlane.xlu0 %909
        %v911 = vsel %vm517, %v905, 0.0
        %912 = vadd.xlane.f32.xlu0 %v911
        %v913 = vpop.xlane.xlu0 %912
        %v914 = vmax.f32 %v910, 1e-24
        %v915 = vmax.f32 %v913, 1e-24
        %v916 = vrsqrt.pop %v914
        %v917 = vmul.f32 %v916, %v914
        %v918 = vmul.f32 %v917, %v916
        %v919 = vmul.f32 0.5, %v918
        %v920 = vsub.f32 1.5, %v919
        %v921 = vmul.f32 %v916, %v920
        %vm922 = vweird.f32 %v914
        %vm923 = vweird.f32 %v916
        %vm924 = vmor %vm922, %vm923
        %v925 = vsel %vm924, %v916, %v921
        %v926 = vrsqrt.pop %v915
        %v927 = vmul.f32 %v926, %v915
        %v928 = vmul.f32 %v927, %v926
        %v929 = vmul.f32 0.5, %v928
        %v930 = vsub.f32 1.5, %v929
        %v931 = vmul.f32 %v926, %v930
        %vm932 = vweird.f32 %v915
        %vm933 = vweird.f32 %v926
        %vm934 = vmor %vm932, %vm933
        %v935 = vsel %vm934, %v926, %v931
        %v936 = vmul.f32 %v896, %v925
        %v937 = vmul.f32 %v897, %v935
        %940 = vrot.lane.b32.xlu0 %v936, 96
        %v941 = vpop.permute.xlu0 %940
        %942 = vrot.lane.b32.xlu0 %v937, 96
        %v943 = vpop.permute.xlu0 %942
        %v946 = vadd.f32 %v889, %v941
        %v947 = vadd.f32 %v890, %v943
        %v948 = vld [vmem:[%s417] sm:$0xff]
        %v949 = vld [vmem:[%s417 + $0x8] sm:$0xff]
        %v950 = vld [vmem:[%s417 + $0x10] sm:$0xff]
        %v951 = vld [vmem:[%s417 + $0x18] sm:$0xff]
        %v952 = vld [vmem:[%s417 + $0x20] sm:$0xff]
        %v953 = vld [vmem:[%s417 + $0x28] sm:$0xff]
        %v954 = vld [vmem:[%s417 + $0x30] sm:$0xff]
        %v955 = vld [vmem:[%s417 + $0x38] sm:$0xff]
        %v956 = vld [vmem:[%s417 + $0x40] sm:$0xff]
        %v957 = vld [vmem:[%s417 + $0x48] sm:$0xff]
        %v958 = vld [vmem:[%s417 + $0x50] sm:$0xff]
        %v959 = vld [vmem:[%s417 + $0x58] sm:$0xff]
        %v960 = vld [vmem:[%s427] sm:$0xff]
        %v961 = vld [vmem:[%s427 + $0x8] sm:$0xff]
        %v962 = vld [vmem:[%s427 + $0x10] sm:$0xff]
        %v963 = vld [vmem:[%s427 + $0x18] sm:$0xff]
        %v964 = vld [vmem:[%s427 + $0x20] sm:$0xff]
        %v965 = vld [vmem:[%s427 + $0x28] sm:$0xff]
        %v966 = vld [vmem:[%s427 + $0x30] sm:$0xff]
        %v967 = vld [vmem:[%s427 + $0x38] sm:$0xff]
        %v968 = vld [vmem:[%s427 + $0x40] sm:$0xff]
        %v969 = vld [vmem:[%s427 + $0x48] sm:$0xff]
        %v970 = vld [vmem:[%s427 + $0x50] sm:$0xff]
        %v971 = vld [vmem:[%s427 + $0x58] sm:$0xff]
        %v972 = vld [vmem:[%s495] sm:$0x7]
        %v973 = vld [vmem:[%s499] sm:$0x7]
        %v974 = vperm.slane %v972, 0
        %v976 = vsel %vm517, %v692, 0
        %v979 = vsel %vm517, %v693, 0
        %v982 = vsel %vm517, %v823, 0
        %v985 = vsel %vm517, %v824, 0
        %v988 = vsel %vm517, %v946, 0
        %v991 = vsel %vm517, %v947, 0
        %993 = vmatpush.msra.mxu0 0.0
        %994 = vmatpush.msra.mxu0 0.0
        %995 = vmatpush.msra.mxu0 0.0
        %996 = vmatpush.msra.mxu0 0.0
        %997 = vmatpush.msra.mxu0 0.0
        %998 = vmatpush.msra.mxu0 0.0
        %999 = vmatpush.msra.mxu0 0.0
        %1000 = vmatpush.msra.mxu0 0.0
        %1001 = vmatpush.msra.mxu0 0.0
        %1002 = vmatpush.msra.mxu0 0.0
        %1003 = vmatpush.msra.mxu0 0.0
        %1004 = vmatpush.msra.mxu0 0.0
        %1005 = vmatpush.msra.mxu0 %v951
        %1006 = vmatpush.msra.mxu0 %v950
        %1007 = vmatpush.msra.mxu0 %v949
        %1008 = vmatpush.msra.mxu0 %v948
        %1009 = vmatmul.f32.gmra.mxu0 %v976
        %v1010 = vpop.f32.mrf.mxu0
        %v1011 = vadd.f32 %v974, %v1010
        %1012 = vmatmul.f32.gmra.mxu0 %v979
        %v1013 = vpop.f32.mrf.mxu0
        %v1014 = vadd.f32 %v974, %v1013
        %1015 = vmatmul.f32.gmra.mxu0 %v982
        %v1016 = vpop.f32.mrf.mxu0
        %v1017 = vadd.f32 %v974, %v1016
        %1018 = vmatmul.f32.gmra.mxu0 %v985
        %v1019 = vpop.f32.mrf.mxu0
        %v1020 = vadd.f32 %v974, %v1019
        %1021 = vmatmul.f32.gmra.mxu0 %v988
        %v1022 = vpop.f32.mrf.mxu0
        %v1023 = vadd.f32 %v974, %v1022
        %1024 = vmatmul.f32.gmra.mxu0 %v991
        %v1025 = vpop.f32.mrf.mxu0
        %v1026 = vadd.f32 %v974, %v1025
        %1027 = vdwg.mxu0
        %v1028 = vperm.slane %v972, 1
        %1029 = vmatpush.msra.mxu0 0.0
        %1030 = vmatpush.msra.mxu0 0.0
        %1031 = vmatpush.msra.mxu0 0.0
        %1032 = vmatpush.msra.mxu0 0.0
        %1033 = vmatpush.msra.mxu0 0.0
        %1034 = vmatpush.msra.mxu0 0.0
        %1035 = vmatpush.msra.mxu0 0.0
        %1036 = vmatpush.msra.mxu0 0.0
        %1037 = vmatpush.msra.mxu0 0.0
        %1038 = vmatpush.msra.mxu0 0.0
        %1039 = vmatpush.msra.mxu0 0.0
        %1040 = vmatpush.msra.mxu0 0.0
        %1041 = vmatpush.msra.mxu0 %v955
        %1042 = vmatpush.msra.mxu0 %v954
        %1043 = vmatpush.msra.mxu0 %v953
        %1044 = vmatpush.msra.mxu0 %v952
        %1045 = vmatmul.f32.gmra.mxu0 %v976
        %v1046 = vpop.f32.mrf.mxu0
        %v1047 = vadd.f32 %v1028, %v1046
        %1048 = vmatmul.f32.gmra.mxu0 %v979
        %v1049 = vpop.f32.mrf.mxu0
        %v1050 = vadd.f32 %v1028, %v1049
        %1051 = vmatmul.f32.gmra.mxu0 %v982
        %v1052 = vpop.f32.mrf.mxu0
        %v1053 = vadd.f32 %v1028, %v1052
        %1054 = vmatmul.f32.gmra.mxu0 %v985
        %v1055 = vpop.f32.mrf.mxu0
        %v1056 = vadd.f32 %v1028, %v1055
        %1057 = vmatmul.f32.gmra.mxu0 %v988
        %v1058 = vpop.f32.mrf.mxu0
        %v1059 = vadd.f32 %v1028, %v1058
        %1060 = vmatmul.f32.gmra.mxu0 %v991
        %v1061 = vpop.f32.mrf.mxu0
        %v1062 = vadd.f32 %v1028, %v1061
        %1063 = vdwg.mxu0
        %v1064 = vperm.slane %v972, 2
        %1065 = vmatpush.msra.mxu0 0.0
        %1066 = vmatpush.msra.mxu0 0.0
        %1067 = vmatpush.msra.mxu0 0.0
        %1068 = vmatpush.msra.mxu0 0.0
        %1069 = vmatpush.msra.mxu0 0.0
        %1070 = vmatpush.msra.mxu0 0.0
        %1071 = vmatpush.msra.mxu0 0.0
        %1072 = vmatpush.msra.mxu0 0.0
        %1073 = vmatpush.msra.mxu0 0.0
        %1074 = vmatpush.msra.mxu0 0.0
        %1075 = vmatpush.msra.mxu0 0.0
        %1076 = vmatpush.msra.mxu0 0.0
        %1077 = vmatpush.msra.mxu0 %v959
        %1078 = vmatpush.msra.mxu0 %v958
        %1079 = vmatpush.msra.mxu0 %v957
        %1080 = vmatpush.msra.mxu0 %v956
        %1081 = vmatmul.f32.gmra.mxu0 %v976
        %v1082 = vpop.f32.mrf.mxu0
        %v1083 = vadd.f32 %v1064, %v1082
        %1084 = vmatmul.f32.gmra.mxu0 %v979
        %v1085 = vpop.f32.mrf.mxu0
        %v1086 = vadd.f32 %v1064, %v1085
        %1087 = vmatmul.f32.gmra.mxu0 %v982
        %v1088 = vpop.f32.mrf.mxu0
        %v1089 = vadd.f32 %v1064, %v1088
        %1090 = vmatmul.f32.gmra.mxu0 %v985
        %v1091 = vpop.f32.mrf.mxu0
        %v1092 = vadd.f32 %v1064, %v1091
        %1093 = vmatmul.f32.gmra.mxu0 %v988
        %v1094 = vpop.f32.mrf.mxu0
        %v1095 = vadd.f32 %v1064, %v1094
        %1096 = vmatmul.f32.gmra.mxu0 %v991
        %v1097 = vpop.f32.mrf.mxu0
        %v1098 = vadd.f32 %v1064, %v1097
        %1099 = vdwg.mxu0
        %v1100 = vperm.slane %v973, 0
        %v1102 = vsel %vm517, 0.0, 0
        %1104 = vmatpush.msra.mxu0 0.0
        %1105 = vmatpush.msra.mxu0 0.0
        %1106 = vmatpush.msra.mxu0 0.0
        %1107 = vmatpush.msra.mxu0 0.0
        %1108 = vmatpush.msra.mxu0 0.0
        %1109 = vmatpush.msra.mxu0 0.0
        %1110 = vmatpush.msra.mxu0 0.0
        %1111 = vmatpush.msra.mxu0 0.0
        %1112 = vmatpush.msra.mxu0 0.0
        %1113 = vmatpush.msra.mxu0 0.0
        %1114 = vmatpush.msra.mxu0 0.0
        %1115 = vmatpush.msra.mxu0 0.0
        %1116 = vmatpush.msra.mxu0 %v963
        %1117 = vmatpush.msra.mxu0 %v962
        %1118 = vmatpush.msra.mxu0 %v961
        %1119 = vmatpush.msra.mxu0 %v960
        %1120 = vmatmul.f32.gmra.mxu0 %v1102
        %v1121 = vpop.f32.mrf.mxu0
        %v1122 = vadd.f32 %v1100, %v1121
        %1123 = vmatmul.f32.gmra.mxu0 %v1102
        %v1124 = vpop.f32.mrf.mxu0
        %v1125 = vadd.f32 %v1100, %v1124
        %1126 = vdwg.mxu0
        %v1127 = vperm.slane %v973, 1
        %1128 = vmatpush.msra.mxu0 0.0
        %1129 = vmatpush.msra.mxu0 0.0
        %1130 = vmatpush.msra.mxu0 0.0
        %1131 = vmatpush.msra.mxu0 0.0
        %1132 = vmatpush.msra.mxu0 0.0
        %1133 = vmatpush.msra.mxu0 0.0
        %1134 = vmatpush.msra.mxu0 0.0
        %1135 = vmatpush.msra.mxu0 0.0
        %1136 = vmatpush.msra.mxu0 0.0
        %1137 = vmatpush.msra.mxu0 0.0
        %1138 = vmatpush.msra.mxu0 0.0
        %1139 = vmatpush.msra.mxu0 0.0
        %1140 = vmatpush.msra.mxu0 %v967
        %1141 = vmatpush.msra.mxu0 %v966
        %1142 = vmatpush.msra.mxu0 %v965
        %1143 = vmatpush.msra.mxu0 %v964
        %1144 = vmatmul.f32.gmra.mxu0 %v1102
        %v1145 = vpop.f32.mrf.mxu0
        %v1146 = vadd.f32 %v1127, %v1145
        %1147 = vmatmul.f32.gmra.mxu0 %v1102
        %v1148 = vpop.f32.mrf.mxu0
        %v1149 = vadd.f32 %v1127, %v1148
        %1150 = vdwg.mxu0
        %v1151 = vperm.slane %v973, 2
        %1152 = vmatpush.msra.mxu0 0.0
        %1153 = vmatpush.msra.mxu0 0.0
        %1154 = vmatpush.msra.mxu0 0.0
        %1155 = vmatpush.msra.mxu0 0.0
        %1156 = vmatpush.msra.mxu0 0.0
        %1157 = vmatpush.msra.mxu0 0.0
        %1158 = vmatpush.msra.mxu0 0.0
        %1159 = vmatpush.msra.mxu0 0.0
        %1160 = vmatpush.msra.mxu0 0.0
        %1161 = vmatpush.msra.mxu0 0.0
        %1162 = vmatpush.msra.mxu0 0.0
        %1163 = vmatpush.msra.mxu0 0.0
        %1164 = vmatpush.msra.mxu0 %v971
        %1165 = vmatpush.msra.mxu0 %v970
        %1166 = vmatpush.msra.mxu0 %v969
        %1167 = vmatpush.msra.mxu0 %v968
        %1168 = vmatmul.f32.gmra.mxu0 %v1102
        %v1169 = vpop.f32.mrf.mxu0
        %v1170 = vadd.f32 %v1151, %v1169
        %1171 = vmatmul.f32.gmra.mxu0 %v1102
        %v1172 = vpop.f32.mrf.mxu0
        %v1173 = vadd.f32 %v1151, %v1172
        %1174 = vdwg.mxu0
        %v1175 = vadd.f32 %v1011, %v1122
        %v1176 = vadd.f32 %v1014, %v1125
        %v1177 = vxor.u32 %v1175, 2147483648
        %v1178 = vxor.u32 %v1176, 2147483648
        %v1179 = vmul.f32 %v1177, 1.442695
        %v1180 = vpow.pop %v1179
        %v1181 = vmul.f32 %v1178, 1.442695
        %v1182 = vpow.pop %v1181
        %v1183 = vadd.f32 %v1180, 1.0
        %v1184 = vadd.f32 %v1182, 1.0
        %v1185 = vrcp.pop %v1183
        %v1186 = vmul.f32 %v1183, %v1185
        %v1187 = vsub.f32 1.0, %v1186
        %v1188 = vmul.f32 %v1185, %v1187
        %v1189 = vadd.f32 %v1185, %v1188
        %vm1190 = vweird.f32 %v1183
        %vm1191 = vweird.f32 %v1185
        %vm1192 = vmor %vm1190, %vm1191
        %v1193 = vsel %vm1192, %v1185, %v1189
        %v1194 = vand.u32 2147483647, %v1183
        %vm1195 = vcmp.eq.f32.partialorder %v1194, 8.507059e+37
        %v1196 = vand.u32 %v1183, 2147483648
        %v1197 = vor.u32 1.1754944e-38, %v1196
        %v1198 = vsel %vm1195, %v1197, %v1193
        %v1199 = vmul.f32 1.0, %v1198
        %v1200 = vrcp.pop %v1184
        %v1201 = vmul.f32 %v1184, %v1200
        %v1202 = vsub.f32 1.0, %v1201
        %v1203 = vmul.f32 %v1200, %v1202
        %v1204 = vadd.f32 %v1200, %v1203
        %vm1205 = vweird.f32 %v1184
        %vm1206 = vweird.f32 %v1200
        %vm1207 = vmor %vm1205, %vm1206
        %v1208 = vsel %vm1207, %v1200, %v1204
        %v1209 = vand.u32 2147483647, %v1184
        %vm1210 = vcmp.eq.f32.partialorder %v1209, 8.507059e+37
        %v1211 = vand.u32 %v1184, 2147483648
        %v1212 = vor.u32 1.1754944e-38, %v1211
        %v1213 = vsel %vm1210, %v1212, %v1208
        %v1214 = vmul.f32 1.0, %v1213
        %v1215 = vadd.f32 %v1047, %v1146
        %v1216 = vadd.f32 %v1050, %v1149
        %v1217 = vxor.u32 %v1215, 2147483648
        %v1218 = vxor.u32 %v1216, 2147483648
        %v1219 = vmul.f32 %v1217, 1.442695
        %v1220 = vpow.pop %v1219
        %v1221 = vmul.f32 %v1218, 1.442695
        %v1222 = vpow.pop %v1221
        %v1223 = vadd.f32 %v1220, 1.0
        %v1224 = vadd.f32 %v1222, 1.0
        %v1225 = vrcp.pop %v1223
        %v1226 = vmul.f32 %v1223, %v1225
        %v1227 = vsub.f32 1.0, %v1226
        %v1228 = vmul.f32 %v1225, %v1227
        %v1229 = vadd.f32 %v1225, %v1228
        %vm1230 = vweird.f32 %v1223
        %vm1231 = vweird.f32 %v1225
        %vm1232 = vmor %vm1230, %vm1231
        %v1233 = vsel %vm1232, %v1225, %v1229
        %v1234 = vand.u32 2147483647, %v1223
        %vm1235 = vcmp.eq.f32.partialorder %v1234, 8.507059e+37
        %v1236 = vand.u32 %v1223, 2147483648
        %v1237 = vor.u32 1.1754944e-38, %v1236
        %v1238 = vsel %vm1235, %v1237, %v1233
        %v1239 = vmul.f32 1.0, %v1238
        %v1240 = vrcp.pop %v1224
        %v1241 = vmul.f32 %v1224, %v1240
        %v1242 = vsub.f32 1.0, %v1241
        %v1243 = vmul.f32 %v1240, %v1242
        %v1244 = vadd.f32 %v1240, %v1243
        %vm1245 = vweird.f32 %v1224
        %vm1246 = vweird.f32 %v1240
        %vm1247 = vmor %vm1245, %vm1246
        %v1248 = vsel %vm1247, %v1240, %v1244
        %v1249 = vand.u32 2147483647, %v1224
        %vm1250 = vcmp.eq.f32.partialorder %v1249, 8.507059e+37
        %v1251 = vand.u32 %v1224, 2147483648
        %v1252 = vor.u32 1.1754944e-38, %v1251
        %v1253 = vsel %vm1250, %v1252, %v1248
        %v1254 = vmul.f32 1.0, %v1253
        %v1255 = vmul.f32 %v1199, %v1170
        %v1256 = vmul.f32 %v1214, %v1173
        %v1257 = vadd.f32 %v1083, %v1255
        %v1258 = vadd.f32 %v1086, %v1256
        %v1259 = vtanh.pop %v1257
        %v1260 = vtanh.pop %v1258
        %v1261 = vsub.f32 1.0, %v1239
        %v1262 = vsub.f32 1.0, %v1254
        %v1263 = vmul.f32 %v1261, %v1259
        %v1264 = vmul.f32 %v1262, %v1260
        %v1265 = vmul.f32 %v1239, 0.0
        %v1266 = vmul.f32 %v1254, 0.0
        %v1267 = vadd.f32 %v1263, %v1265
        %v1268 = vadd.f32 %v1264, %v1266
        %1269 = vst.msk [vmem:[%s487] sm:$0xff] %vm517, %v1267
        %1270 = vst.msk [vmem:[%s487 + $0x8] sm:$0xff] %vm517, %v1268
        %v1272 = vsel %vm517, %v1267, 0
        %v1275 = vsel %vm517, %v1268, 0
        %1277 = vmatpush.msra.mxu0 0.0
        %1278 = vmatpush.msra.mxu0 0.0
        %1279 = vmatpush.msra.mxu0 0.0
        %1280 = vmatpush.msra.mxu0 0.0
        %1281 = vmatpush.msra.mxu0 0.0
        %1282 = vmatpush.msra.mxu0 0.0
        %1283 = vmatpush.msra.mxu0 0.0
        %1284 = vmatpush.msra.mxu0 0.0
        %1285 = vmatpush.msra.mxu0 0.0
        %1286 = vmatpush.msra.mxu0 0.0
        %1287 = vmatpush.msra.mxu0 0.0
        %1288 = vmatpush.msra.mxu0 0.0
        %1289 = vmatpush.msra.mxu0 %v963
        %1290 = vmatpush.msra.mxu0 %v962
        %1291 = vmatpush.msra.mxu0 %v961
        %1292 = vmatpush.msra.mxu0 %v960
        %1293 = vmatmul.f32.gmra.mxu0 %v1272
        %v1294 = vpop.f32.mrf.mxu0
        %v1295 = vadd.f32 %v1100, %v1294
        %1296 = vmatmul.f32.gmra.mxu0 %v1275
        %v1297 = vpop.f32.mrf.mxu0
        %v1298 = vadd.f32 %v1100, %v1297
        %1299 = vdwg.mxu0
        %1300 = vmatpush.msra.mxu0 0.0
        %1301 = vmatpush.msra.mxu0 0.0
        %1302 = vmatpush.msra.mxu0 0.0
        %1303 = vmatpush.msra.mxu0 0.0
        %1304 = vmatpush.msra.mxu0 0.0
        %1305 = vmatpush.msra.mxu0 0.0
        %1306 = vmatpush.msra.mxu0 0.0
        %1307 = vmatpush.msra.mxu0 0.0
        %1308 = vmatpush.msra.mxu0 0.0
        %1309 = vmatpush.msra.mxu0 0.0
        %1310 = vmatpush.msra.mxu0 0.0
        %1311 = vmatpush.msra.mxu0 0.0
        %1312 = vmatpush.msra.mxu0 %v967
        %1313 = vmatpush.msra.mxu0 %v966
        %1314 = vmatpush.msra.mxu0 %v965
        %1315 = vmatpush.msra.mxu0 %v964
        %1316 = vmatmul.f32.gmra.mxu0 %v1272
        %v1317 = vpop.f32.mrf.mxu0
        %v1318 = vadd.f32 %v1127, %v1317
        %1319 = vmatmul.f32.gmra.mxu0 %v1275
        %v1320 = vpop.f32.mrf.mxu0
        %v1321 = vadd.f32 %v1127, %v1320
        %1322 = vdwg.mxu0
        %1323 = vmatpush.msra.mxu0 0.0
        %1324 = vmatpush.msra.mxu0 0.0
        %1325 = vmatpush.msra.mxu0 0.0
        %1326 = vmatpush.msra.mxu0 0.0
        %1327 = vmatpush.msra.mxu0 0.0
        %1328 = vmatpush.msra.mxu0 0.0
        %1329 = vmatpush.msra.mxu0 0.0
        %1330 = vmatpush.msra.mxu0 0.0
        %1331 = vmatpush.msra.mxu0 0.0
        %1332 = vmatpush.msra.mxu0 0.0
        %1333 = vmatpush.msra.mxu0 0.0
        %1334 = vmatpush.msra.mxu0 0.0
        %1335 = vmatpush.msra.mxu0 %v971
        %1336 = vmatpush.msra.mxu0 %v970
        %1337 = vmatpush.msra.mxu0 %v969
        %1338 = vmatpush.msra.mxu0 %v968
        %1339 = vmatmul.f32.gmra.mxu0 %v1272
        %v1340 = vpop.f32.mrf.mxu0
        %v1341 = vadd.f32 %v1151, %v1340
        %1342 = vmatmul.f32.gmra.mxu0 %v1275
        %v1343 = vpop.f32.mrf.mxu0
        %v1344 = vadd.f32 %v1151, %v1343
        %1345 = vdwg.mxu0
        %v1346 = vadd.f32 %v1017, %v1295
        %v1347 = vadd.f32 %v1020, %v1298
        %v1348 = vxor.u32 %v1346, 2147483648
        %v1349 = vxor.u32 %v1347, 2147483648
        %v1350 = vmul.f32 %v1348, 1.442695
        %v1351 = vpow.pop %v1350
        %v1352 = vmul.f32 %v1349, 1.442695
        %v1353 = vpow.pop %v1352
        %v1354 = vadd.f32 %v1351, 1.0
        %v1355 = vadd.f32 %v1353, 1.0
        %v1356 = vrcp.pop %v1354
        %v1357 = vmul.f32 %v1354, %v1356
        %v1358 = vsub.f32 1.0, %v1357
        %v1359 = vmul.f32 %v1356, %v1358
        %v1360 = vadd.f32 %v1356, %v1359
        %vm1361 = vweird.f32 %v1354
        %vm1362 = vweird.f32 %v1356
        %vm1363 = vmor %vm1361, %vm1362
        %v1364 = vsel %vm1363, %v1356, %v1360
        %v1365 = vand.u32 2147483647, %v1354
        %vm1366 = vcmp.eq.f32.partialorder %v1365, 8.507059e+37
        %v1367 = vand.u32 %v1354, 2147483648
        %v1368 = vor.u32 1.1754944e-38, %v1367
        %v1369 = vsel %vm1366, %v1368, %v1364
        %v1370 = vmul.f32 1.0, %v1369
        %v1371 = vrcp.pop %v1355
        %v1372 = vmul.f32 %v1355, %v1371
        %v1373 = vsub.f32 1.0, %v1372
        %v1374 = vmul.f32 %v1371, %v1373
        %v1375 = vadd.f32 %v1371, %v1374
        %vm1376 = vweird.f32 %v1355
        %vm1377 = vweird.f32 %v1371
        %vm1378 = vmor %vm1376, %vm1377
        %v1379 = vsel %vm1378, %v1371, %v1375
        %v1380 = vand.u32 2147483647, %v1355
        %vm1381 = vcmp.eq.f32.partialorder %v1380, 8.507059e+37
        %v1382 = vand.u32 %v1355, 2147483648
        %v1383 = vor.u32 1.1754944e-38, %v1382
        %v1384 = vsel %vm1381, %v1383, %v1379
        %v1385 = vmul.f32 1.0, %v1384
        %v1386 = vadd.f32 %v1053, %v1318
        %v1387 = vadd.f32 %v1056, %v1321
        %v1388 = vxor.u32 %v1386, 2147483648
        %v1389 = vxor.u32 %v1387, 2147483648
        %v1390 = vmul.f32 %v1388, 1.442695
        %v1391 = vpow.pop %v1390
        %v1392 = vmul.f32 %v1389, 1.442695
        %v1393 = vpow.pop %v1392
        %v1394 = vadd.f32 %v1391, 1.0
        %v1395 = vadd.f32 %v1393, 1.0
        %v1396 = vrcp.pop %v1394
        %v1397 = vmul.f32 %v1394, %v1396
        %v1398 = vsub.f32 1.0, %v1397
        %v1399 = vmul.f32 %v1396, %v1398
        %v1400 = vadd.f32 %v1396, %v1399
        %vm1401 = vweird.f32 %v1394
        %vm1402 = vweird.f32 %v1396
        %vm1403 = vmor %vm1401, %vm1402
        %v1404 = vsel %vm1403, %v1396, %v1400
        %v1405 = vand.u32 2147483647, %v1394
        %vm1406 = vcmp.eq.f32.partialorder %v1405, 8.507059e+37
        %v1407 = vand.u32 %v1394, 2147483648
        %v1408 = vor.u32 1.1754944e-38, %v1407
        %v1409 = vsel %vm1406, %v1408, %v1404
        %v1410 = vmul.f32 1.0, %v1409
        %v1411 = vrcp.pop %v1395
        %v1412 = vmul.f32 %v1395, %v1411
        %v1413 = vsub.f32 1.0, %v1412
        %v1414 = vmul.f32 %v1411, %v1413
        %v1415 = vadd.f32 %v1411, %v1414
        %vm1416 = vweird.f32 %v1395
        %vm1417 = vweird.f32 %v1411
        %vm1418 = vmor %vm1416, %vm1417
        %v1419 = vsel %vm1418, %v1411, %v1415
        %v1420 = vand.u32 2147483647, %v1395
        %vm1421 = vcmp.eq.f32.partialorder %v1420, 8.507059e+37
        %v1422 = vand.u32 %v1395, 2147483648
        %v1423 = vor.u32 1.1754944e-38, %v1422
        %v1424 = vsel %vm1421, %v1423, %v1419
        %v1425 = vmul.f32 1.0, %v1424
        %v1426 = vmul.f32 %v1370, %v1341
        %v1427 = vmul.f32 %v1385, %v1344
        %v1428 = vadd.f32 %v1089, %v1426
        %v1429 = vadd.f32 %v1092, %v1427
        %v1430 = vtanh.pop %v1428
        %v1431 = vtanh.pop %v1429
        %v1432 = vsub.f32 1.0, %v1410
        %v1433 = vsub.f32 1.0, %v1425
        %v1434 = vmul.f32 %v1432, %v1430
        %v1435 = vmul.f32 %v1433, %v1431
        %v1436 = vmul.f32 %v1410, %v1267
        %v1437 = vmul.f32 %v1425, %v1268
        %v1438 = vadd.f32 %v1434, %v1436
        %v1439 = vadd.f32 %v1435, %v1437
        %s1440 = scalar_lea.vmem %s487, 16 [#allocation10]
        %1441 = vst.msk [vmem:[%s1440] sm:$0xff] %vm517, %v1438
        %1442 = vst.msk [vmem:[%s1440 + $0x8] sm:$0xff] %vm517, %v1439
        %v1444 = vsel %vm517, %v1438, 0
        %v1447 = vsel %vm517, %v1439, 0
        %1449 = vmatpush.msra.mxu0 0.0
        %1450 = vmatpush.msra.mxu0 0.0
        %1451 = vmatpush.msra.mxu0 0.0
        %1452 = vmatpush.msra.mxu0 0.0
        %1453 = vmatpush.msra.mxu0 0.0
        %1454 = vmatpush.msra.mxu0 0.0
        %1455 = vmatpush.msra.mxu0 0.0
        %1456 = vmatpush.msra.mxu0 0.0
        %1457 = vmatpush.msra.mxu0 0.0
        %1458 = vmatpush.msra.mxu0 0.0
        %1459 = vmatpush.msra.mxu0 0.0
        %1460 = vmatpush.msra.mxu0 0.0
        %1461 = vmatpush.msra.mxu0 %v963
        %1462 = vmatpush.msra.mxu0 %v962
        %1463 = vmatpush.msra.mxu0 %v961
        %1464 = vmatpush.msra.mxu0 %v960
        %1465 = vmatmul.f32.gmra.mxu0 %v1444
        %v1466 = vpop.f32.mrf.mxu0
        %v1467 = vadd.f32 %v1100, %v1466
        %1468 = vmatmul.f32.gmra.mxu0 %v1447
        %v1469 = vpop.f32.mrf.mxu0
        %v1470 = vadd.f32 %v1100, %v1469
        %1471 = vdwg.mxu0
        %1472 = vmatpush.msra.mxu0 0.0
        %1473 = vmatpush.msra.mxu0 0.0
        %1474 = vmatpush.msra.mxu0 0.0
        %1475 = vmatpush.msra.mxu0 0.0
        %1476 = vmatpush.msra.mxu0 0.0
        %1477 = vmatpush.msra.mxu0 0.0
        %1478 = vmatpush.msra.mxu0 0.0
        %1479 = vmatpush.msra.mxu0 0.0
        %1480 = vmatpush.msra.mxu0 0.0
        %1481 = vmatpush.msra.mxu0 0.0
        %1482 = vmatpush.msra.mxu0 0.0
        %1483 = vmatpush.msra.mxu0 0.0
        %1484 = vmatpush.msra.mxu0 %v967
        %1485 = vmatpush.msra.mxu0 %v966
        %1486 = vmatpush.msra.mxu0 %v965
        %1487 = vmatpush.msra.mxu0 %v964
        %1488 = vmatmul.f32.gmra.mxu0 %v1444
        %v1489 = vpop.f32.mrf.mxu0
        %v1490 = vadd.f32 %v1127, %v1489
        %1491 = vmatmul.f32.gmra.mxu0 %v1447
        %v1492 = vpop.f32.mrf.mxu0
        %v1493 = vadd.f32 %v1127, %v1492
        %1494 = vdwg.mxu0
        %1495 = vmatpush.msra.mxu0 0.0
        %1496 = vmatpush.msra.mxu0 0.0
        %1497 = vmatpush.msra.mxu0 0.0
        %1498 = vmatpush.msra.mxu0 0.0
        %1499 = vmatpush.msra.mxu0 0.0
        %1500 = vmatpush.msra.mxu0 0.0
        %1501 = vmatpush.msra.mxu0 0.0
        %1502 = vmatpush.msra.mxu0 0.0
        %1503 = vmatpush.msra.mxu0 0.0
        %1504 = vmatpush.msra.mxu0 0.0
        %1505 = vmatpush.msra.mxu0 0.0
        %1506 = vmatpush.msra.mxu0 0.0
        %1507 = vmatpush.msra.mxu0 %v971
        %1508 = vmatpush.msra.mxu0 %v970
        %1509 = vmatpush.msra.mxu0 %v969
        %1510 = vmatpush.msra.mxu0 %v968
        %1511 = vmatmul.f32.gmra.mxu0 %v1444
        %v1512 = vpop.f32.mrf.mxu0
        %v1513 = vadd.f32 %v1151, %v1512
        %1514 = vmatmul.f32.gmra.mxu0 %v1447
        %v1515 = vpop.f32.mrf.mxu0
        %v1516 = vadd.f32 %v1151, %v1515
        %1517 = vdwg.mxu0
        %v1518 = vadd.f32 %v1023, %v1467
        %v1519 = vadd.f32 %v1026, %v1470
        %v1520 = vxor.u32 %v1518, 2147483648
        %v1521 = vxor.u32 %v1519, 2147483648
        %v1522 = vmul.f32 %v1520, 1.442695
        %v1523 = vpow.pop %v1522
        %v1524 = vmul.f32 %v1521, 1.442695
        %v1525 = vpow.pop %v1524
        %v1526 = vadd.f32 %v1523, 1.0
        %v1527 = vadd.f32 %v1525, 1.0
        %v1528 = vrcp.pop %v1526
        %v1529 = vmul.f32 %v1526, %v1528
        %v1530 = vsub.f32 1.0, %v1529
        %v1531 = vmul.f32 %v1528, %v1530
        %v1532 = vadd.f32 %v1528, %v1531
        %vm1533 = vweird.f32 %v1526
        %vm1534 = vweird.f32 %v1528
        %vm1535 = vmor %vm1533, %vm1534
        %v1536 = vsel %vm1535, %v1528, %v1532
        %v1537 = vand.u32 2147483647, %v1526
        %vm1538 = vcmp.eq.f32.partialorder %v1537, 8.507059e+37
        %v1539 = vand.u32 %v1526, 2147483648
        %v1540 = vor.u32 1.1754944e-38, %v1539
        %v1541 = vsel %vm1538, %v1540, %v1536
        %v1542 = vmul.f32 1.0, %v1541
        %v1543 = vrcp.pop %v1527
        %v1544 = vmul.f32 %v1527, %v1543
        %v1545 = vsub.f32 1.0, %v1544
        %v1546 = vmul.f32 %v1543, %v1545
        %v1547 = vadd.f32 %v1543, %v1546
        %vm1548 = vweird.f32 %v1527
        %vm1549 = vweird.f32 %v1543
        %vm1550 = vmor %vm1548, %vm1549
        %v1551 = vsel %vm1550, %v1543, %v1547
        %v1552 = vand.u32 2147483647, %v1527
        %vm1553 = vcmp.eq.f32.partialorder %v1552, 8.507059e+37
        %v1554 = vand.u32 %v1527, 2147483648
        %v1555 = vor.u32 1.1754944e-38, %v1554
        %v1556 = vsel %vm1553, %v1555, %v1551
        %v1557 = vmul.f32 1.0, %v1556
        %v1558 = vadd.f32 %v1059, %v1490
        %v1559 = vadd.f32 %v1062, %v1493
        %v1560 = vxor.u32 %v1558, 2147483648
        %v1561 = vxor.u32 %v1559, 2147483648
        %v1562 = vmul.f32 %v1560, 1.442695
        %v1563 = vpow.pop %v1562
        %v1564 = vmul.f32 %v1561, 1.442695
        %v1565 = vpow.pop %v1564
        %v1566 = vadd.f32 %v1563, 1.0
        %v1567 = vadd.f32 %v1565, 1.0
        %v1568 = vrcp.pop %v1566
        %v1569 = vmul.f32 %v1566, %v1568
        %v1570 = vsub.f32 1.0, %v1569
        %v1571 = vmul.f32 %v1568, %v1570
        %v1572 = vadd.f32 %v1568, %v1571
        %vm1573 = vweird.f32 %v1566
        %vm1574 = vweird.f32 %v1568
        %vm1575 = vmor %vm1573, %vm1574
        %v1576 = vsel %vm1575, %v1568, %v1572
        %v1577 = vand.u32 2147483647, %v1566
        %vm1578 = vcmp.eq.f32.partialorder %v1577, 8.507059e+37
        %v1579 = vand.u32 %v1566, 2147483648
        %v1580 = vor.u32 1.1754944e-38, %v1579
        %v1581 = vsel %vm1578, %v1580, %v1576
        %v1582 = vmul.f32 1.0, %v1581
        %v1583 = vrcp.pop %v1567
        %v1584 = vmul.f32 %v1567, %v1583
        %v1585 = vsub.f32 1.0, %v1584
        %v1586 = vmul.f32 %v1583, %v1585
        %v1587 = vadd.f32 %v1583, %v1586
        %vm1588 = vweird.f32 %v1567
        %vm1589 = vweird.f32 %v1583
        %vm1590 = vmor %vm1588, %vm1589
        %v1591 = vsel %vm1590, %v1583, %v1587
        %v1592 = vand.u32 2147483647, %v1567
        %vm1593 = vcmp.eq.f32.partialorder %v1592, 8.507059e+37
        %v1594 = vand.u32 %v1567, 2147483648
        %v1595 = vor.u32 1.1754944e-38, %v1594
        %v1596 = vsel %vm1593, %v1595, %v1591
        %v1597 = vmul.f32 1.0, %v1596
        %v1598 = vmul.f32 %v1542, %v1513
        %v1599 = vmul.f32 %v1557, %v1516
        %v1600 = vadd.f32 %v1095, %v1598
        %v1601 = vadd.f32 %v1098, %v1599
        %v1602 = vtanh.pop %v1600
        %v1603 = vtanh.pop %v1601
        %v1604 = vsub.f32 1.0, %v1582
        %v1605 = vsub.f32 1.0, %v1597
        %v1606 = vmul.f32 %v1604, %v1602
        %v1607 = vmul.f32 %v1605, %v1603
        %v1608 = vmul.f32 %v1582, %v1438
        %v1609 = vmul.f32 %v1597, %v1439
        %v1610 = vadd.f32 %v1606, %v1608
        %v1611 = vadd.f32 %v1607, %v1609
        %s1612 = scalar_lea.vmem %s487, 32 [#allocation10]
        %1613 = vst.msk [vmem:[%s1612] sm:$0xff] %vm517, %v1610
        %1614 = vst.msk [vmem:[%s1612 + $0x8] sm:$0xff] %vm517, %v1611
        %s1615 = sand.u32 %s242, 1
        %s1616 = scalar_lea.sflag [#allocation4], %s1615
        %s1617 = sand.u32 %s242, 1
        %s1618 = smul.addr %s1617, 48
        %s1619 = scalar_lea.vmem [#allocation10], %s1618
        // Predicated region
        $region69: #{tpu_custom_call.1} parent=51 // pred_check
          %p1620 = pneg %p252
        $region70: #{tpu_custom_call.1} parent=51 // pred_check_branch
          %1622 = sbr.rel (%p1620) target = $region72
        $region71: #{tpu_custom_call.1} parent=51 // pred_region
          %1624 = vsyncadd %s1616, 0
          %s1625 = smul.addr %s31, 6
          %s1626 = smul.addr %s1625, 8
          %s1627 = scalar_lea.hbm %s8, %s1626
          %s1628 = sshll.u32 %s1619, 4
          %s1629 = int_to_ptr.vmem [resolvable:$true] %s1628
          %s1630 = sshll.u32 %s1627, 4
          %s1631 = int_to_ptr.hbm [resolvable:$true] %s1630
          %1636 = dma.vmem_to_hbm [thread:$0]  %s1629, 768, %s1631, %s1616, 128, 128, 8
        $region72: #{tpu_custom_call.1} parent=51 // pred_fallthru
          _
      $region52: #{tpu_custom_call.1} parent=5 // pred_fallthru
        _
      %p1637 = scmp.le.s32.totalorder 2, %s26
      // Predicated region
      $region73: #{tpu_custom_call.1} parent=5 // pred_check
        %p1638 = pneg %p1637
      $region74: #{tpu_custom_call.1} parent=5 // pred_check_branch
        %1640 = sbr.rel (%p1638) target = $region76
      $region75: #{tpu_custom_call.1} parent=5 // pred_region
        %s1641 = ssub.s32 %s26, 2
        // Predicated region
        $region77: #{tpu_custom_call.1} parent=75 // pred_check
          %p1642 = pneg %p258
        $region78: #{tpu_custom_call.1} parent=75 // pred_check_branch
          %1644 = sbr.rel (%p1642) target = $region80
        $region79: #{tpu_custom_call.1} parent=75 // pred_region
          %s1645 = sand.u32 %s243, 1
          %s1646 = scalar_lea.sflag [#allocation4], %s1645
          %s1647 = sand.u32 %s243, 1
          %s1648 = smul.addr %s1647, 48
          %s1649 = scalar_lea.vmem [#allocation10], %s1648
          %1651 = dma.done %s1646, 768
        $region80: #{tpu_custom_call.1} parent=75 // pred_fallthru
          _
      $region76: #{tpu_custom_call.1} parent=5 // pred_fallthru
        _
    $region6: #{tpu_custom_call.1} parent=1 // loop_footer
      %s30 = sadd.s32 1, %s26
    $region7: #{tpu_custom_call.1} parent=1 // loop_footer_branch
      %25 = sbr.rel target = $region3
    $region8: #{tpu_custom_call.1} parent=1 // loop_exit
      _
    %1652 = vsyncpa [#allocation3], 1
    %s1653 = scalar_lea.sflag [#allocation3], 1
    %1654 = vsyncpa %s1653, 1
    %1655 = vsyncpa [#allocation6], 1
    %s1656 = scalar_lea.sflag [#allocation6], 1
    %1657 = vsyncpa %s1656, 1
    %1658 = vsyncpa [#allocation9], 1
    %s1659 = scalar_lea.sflag [#allocation9], 1
    %1660 = vsyncpa %s1659, 1
    %1661 = vsyncpa [#allocation4], 1
    %s1662 = scalar_lea.sflag [#allocation4], 1
    %1663 = vsyncpa %s1662, 1

</llo_original>
